<compile_context>
chip_gen: v7x
topology: tpu7x:2x2x1
jax: 0.10.0
libtpu: 0.0.40
codegen_flags: <defaults>
</compile_context>

<pallas_src>
import jax
import jax.numpy as jnp
import numpy as np
from jax import lax
from jax.experimental import pallas as pl
from jax.experimental.pallas import tpu as pltpu

# Shapes implied by the module definition.
CIN = 20            # conv in-channels
COUT = 32           # conv out-channels
K = 5               # conv kernel width, kernel_size=(1, 5)
H = 1               # input height
W = 20              # input width (32 * (W // 2) == 320 == Linear in-features)
W2 = W // 2         # width after MaxPool2d((1, 2))
H1 = 16             # first Linear out-features
NCLS = 2            # classes
JPAD = 12           # pooled-width slots padded so each parity half is 3*128 lanes
HALF = JPAD * COUT  # 384 = 3 * 128 (lane-aligned pooling half)
XCOLS = CIN * W     # 400 input lanes per sample (no 'same' padding of x)
OUTL = 128          # class lanes padded to one full vreg lane width
TB_MAX = 1024       # max batch rows per grid step (fits v7x 64 MiB VMEM)


def _round_up(a, m):
    return (a + m - 1) // m * m


def _seq_kernel(x_ref, wc_ref, bc_ref, w1_ref, b1_ref, w2_ref, b2_ref, out_ref):
    # Stage 1: Conv2d(20,32,(1,5),'same') + bias + ReLU as ONE bf16 GEMM.
    # Conv lane layout: lane = parity*384 + j*32 + cout  (j >= 10 slots are zero).
    xb = x_ref[...].astype(jnp.bfloat16)        # f32 DMA, bf16 MXU operands
    conv = jnp.dot(xb, wc_ref[...], preferred_element_type=jnp.float32)
    conv = jnp.maximum(conv + bc_ref[...], 0.0)                 # (TB, 768) f32

    # Stage 2: MaxPool2d((1,2)) = elementwise max of the two 128-aligned halves.
    pooled = jnp.maximum(conv[:, :HALF], conv[:, HALF:])        # (TB, 384)

    # Stage 3: Flatten + Linear(320,16) + ReLU (channel-major flatten is folded
    # into the w1 relayout).
    h1 = jnp.dot(pooled.astype(jnp.bfloat16), w1_ref[...],
                 preferred_element_type=jnp.float32)
    h1 = jnp.maximum(h1 + b1_ref[...], 0.0)                     # (TB, 16) f32

    # Stage 4: Linear(16,2) + Softmax(dim=1), padded to 128 lanes so the store is
    # an unmasked full-lane write (padded logits are -1e30 -> exp -> 0).
    logits = jnp.dot(h1, w2_ref[...], preferred_element_type=jnp.float32)
    logits = logits + b2_ref[...]                               # (TB, 128)
    m = jnp.max(logits, axis=-1, keepdims=True)
    e = jnp.exp(logits - m)
    out_ref[...] = e / jnp.sum(e, axis=-1, keepdims=True)       # exact divide


def prepare_params(params):
    """One-time relayout of the PyTorch parameters (hoisted out of the call path)."""
    wconv, bconv, w1, b1, w2, b2 = params
    f32 = jnp.float32

    # --- conv weight (COUT, CIN, 1, K) -> expanded (400, 768) matrix with the
    #     'same'-padding boundary taps zeroed into the weight:
    #     wc_big[ci*W + u, p*384 + j*32 + co] = wconv[co, ci, 0, u - (2j+p) + 2]
    wk = wconv[:, :, 0, :].astype(f32)                     # (COUT, CIN, K)
    u = jnp.arange(W)[:, None]                             # input position
    wo = jnp.arange(W)[None, :]                            # conv output position
    tap = u - wo + (K // 2)                                # (W, W)
    valid = (tap >= 0) & (tap < K)
    g = wk[:, :, jnp.clip(tap, 0, K - 1)]                  # (COUT, CIN, W, W)
    g = jnp.where(valid[None, None], g, 0.0)
    g = jnp.transpose(g, (1, 2, 3, 0))                     # (CIN, W_in, W_out, COUT)
    g = g.reshape(CIN, W, W2, 2, COUT)                     # w_out = 2*j + p
    g = jnp.transpose(g, (0, 1, 3, 2, 4))                  # (CIN, W_in, 2, W2, COUT)
    g = jnp.pad(g, ((0, 0), (0, 0), (0, 0), (0, JPAD - W2), (0, 0)))
    wc_big = g.reshape(XCOLS, 2 * HALF).astype(jnp.bfloat16)   # (400, 768) bf16

    # --- conv bias -> (1, 768) in the same (parity, j, cout) lane layout.
    bb = jnp.tile(bconv.astype(f32)[None, None, :], (2, W2, 1))    # (2, 10, 32)
    bb = jnp.pad(bb, ((0, 0), (0, JPAD - W2), (0, 0)))
    bc_big = bb.reshape(1, 2 * HALF)

    # --- Linear(320,16): PyTorch Flatten of (N,COUT,1,W2) is channel-major
    #     (flat = co*W2 + j); relayout rows to lane order (j*32 + co), pad j.
    w1t = jnp.transpose(w1.astype(f32).reshape(H1, COUT, W2), (2, 1, 0))  # (W2,COUT,H1)
    w1t = jnp.pad(w1t, ((0, JPAD - W2), (0, 0), (0, 0)))
    w1_big = w1t.reshape(HALF, H1).astype(jnp.bfloat16)    # (384, 16) bf16
    b1_row = b1.astype(f32).reshape(1, H1)

    # --- Linear(16,2), padded to 128 output lanes for a lane-dense store.
    w2_pad = jnp.zeros((H1, OUTL), f32).at[:, :NCLS].set(w2.astype(f32).T)
    b2_pad = jnp.full((1, OUTL), -1e30, f32).at[0, :NCLS].set(b2.astype(f32))

    return (wc_big, bc_big, w1_big, b1_row, w2_pad, b2_pad)


@jax.jit
def seq_32x1_16_forward(x, prepared):
    """x: (N, 20, 1, 20) float32 (PyTorch NCHW). Returns (N, 2) softmax probs."""
    wc_big, bc_big, w1_big, b1_row, w2_pad, b2_pad = prepared
    n = x.shape[0]
    assert x.shape == (n, CIN, H, W)

    # Pure reshape (layout-compatible, no copy): (N, CIN, 1, W) -> (N, 400).
    x_flat = x.reshape(n, XCOLS)

    # Batch tiling: >=2 grid steps whenever n > 8 so v7x's second TensorCore gets
    # work on the "parallel" axis; TB capped for v7x's 64 MiB VMEM.
    n8 = _round_up(n, 8)
    tb = min(TB_MAX, max(8, _round_up(-(-n8 // 2), 8)))
    n_pad = _round_up(n, tb)
    if n_pad != n:
        # Only batches not divisible by tb pay this copy (tiny for small n).
        x_flat = jnp.pad(x_flat, ((0, n_pad - n), (0, 0)))
    grid = (n_pad // tb,)

    flops = 2 * n_pad * (XCOLS * 2 * HALF + HALF * H1 + H1 * OUTL)
    bytes_accessed = (4 * n_pad * XCOLS + 4 * n_pad * OUTL
                      + 2 * (wc_big.size + w1_big.size)
                      + 4 * (bc_big.size + b1_row.size + w2_pad.size + b2_pad.size))

    out = pl.pallas_call(
        _seq_kernel,
        out_shape=jax.ShapeDtypeStruct((n_pad, OUTL), jnp.float32),
        grid=grid,
        in_specs=[
            pl.BlockSpec((tb, XCOLS), lambda i: (i, 0)),        # activations: tiled
            pl.BlockSpec((XCOLS, 2 * HALF), lambda i: (0, 0)),  # weights: resident
            pl.BlockSpec((1, 2 * HALF), lambda i: (0, 0)),
            pl.BlockSpec((HALF, H1), lambda i: (0, 0)),
            pl.BlockSpec((1, H1), lambda i: (0, 0)),
            pl.BlockSpec((H1, OUTL), lambda i: (0, 0)),
            pl.BlockSpec((1, OUTL), lambda i: (0, 0)),
        ],
        out_specs=pl.BlockSpec((tb, OUTL), lambda i: (i, 0)),
        compiler_params=pltpu.CompilerParams(
            dimension_semantics=("parallel",),
            vmem_limit_bytes=40 * 1024 * 1024),
        cost_estimate=pl.CostEstimate(
            flops=flops, transcendentals=n_pad * OUTL,
            bytes_accessed=bytes_accessed),
    )(x_flat, wc_big, bc_big, w1_big, b1_row, w2_pad, b2_pad)

    # Lane-dense (n_pad, 128) block -> the real (N, 2) probabilities.
    return out[:n, :NCLS]


def reference_forward(x, params):
    """Pure-JAX f32 mirror of the PyTorch module (for correctness checking)."""
    wconv, bconv, w1, b1, w2, b2 = params
    out = lax.conv_general_dilated(
        x, wconv, window_strides=(1, 1), padding='SAME',
        dimension_numbers=('NCHW', 'OIHW', 'NCHW'),
        precision=lax.Precision.HIGHEST)
    out = jnp.maximum(out + bconv[None, :, None, None], 0.0)
    out = lax.reduce_window(out, -jnp.inf, lax.max,
                            (1, 1, 1, 2), (1, 1, 1, 2), 'VALID')
    flat = out.reshape(x.shape[0], -1)
    h1 = jnp.maximum(
        jnp.dot(flat, w1.T, precision=lax.Precision.HIGHEST) + b1, 0.0)
    logits = jnp.dot(h1, w2.T, precision=lax.Precision.HIGHEST) + b2
    return jax.nn.softmax(logits, axis=-1)


if __name__ == "__main__":
    key = jax.random.PRNGKey(0)
    kx, kwc, kbc, kw1, kb1, kw2, kb2 = jax.random.split(key, 7)

    # Deterministic synthetic parameters (shapes from the module __init__).
    params = (
        0.10 * jax.random.normal(kwc, (COUT, CIN, 1, K), dtype=jnp.float32),
        0.10 * jax.random.normal(kbc, (COUT,), dtype=jnp.float32),
        0.05 * jax.random.normal(kw1, (H1, COUT * W2), dtype=jnp.float32),
        0.05 * jax.random.normal(kb1, (H1,), dtype=jnp.float32),
        0.10 * jax.random.normal(kw2, (NCLS, H1), dtype=jnp.float32),
        0.10 * jax.random.normal(kb2, (NCLS,), dtype=jnp.float32),
    )
    prepared = prepare_params(params)   # one-time weight relayout / bf16 cast

    # Input implied by the module: (N, 20, 1, 20); small batch = 2.
    x = jax.random.normal(kx, (2, CIN, H, W), dtype=jnp.float32)

    out = jax.block_until_ready(seq_32x1_16_forward(x, prepared))
    ref = reference_forward(x, params)

    # bf16 GEMM operands with f32 accumulation: tolerance relaxed to 1e-2
    # (typical observed error is <2e-3; the pure-f32 variant passes 1e-3).
    np.testing.assert_allclose(np.asarray(out), np.asarray(ref),
                               atol=1e-2, rtol=1e-2)
    assert np.all(np.isfinite(np.asarray(out)))
    print("KERNEL_OK")
</pallas_src>

<mosaic_0001>
module attributes {stable_mosaic.version = 11 : i64} {
  func.func @_seq_kernel(%arg0: i32, %arg1: memref<8x400xf32, #tpu.memory_space<vmem>>, %arg2: memref<400x768xbf16, #tpu.memory_space<vmem>>, %arg3: memref<1x768xf32, #tpu.memory_space<vmem>>, %arg4: memref<384x16xbf16, #tpu.memory_space<vmem>>, %arg5: memref<1x16xf32, #tpu.memory_space<vmem>>, %arg6: memref<16x128xf32, #tpu.memory_space<vmem>>, %arg7: memref<1x128xf32, #tpu.memory_space<vmem>>, %arg8: memref<8x128xf32, #tpu.memory_space<vmem>>) attributes {dimension_semantics = [#tpu.dimension_semantics<parallel>], iteration_bounds = array<i64: 1>, scalar_prefetch = 0 : i64, scratch_operands = 0 : i64, tpu.core_type = #tpu.core_type<tc>, window_params = [{transform_indices = @transform_0, window_bounds = array<i64: 8, 400>}, {pipeline_mode = #tpu.pipeline_mode<synchronous>, transform_indices = @transform_1, window_bounds = array<i64: 400, 768>}, {pipeline_mode = #tpu.pipeline_mode<synchronous>, transform_indices = @transform_2, window_bounds = array<i64: 1, 768>}, {pipeline_mode = #tpu.pipeline_mode<synchronous>, transform_indices = @transform_3, window_bounds = array<i64: 384, 16>}, {pipeline_mode = #tpu.pipeline_mode<synchronous>, transform_indices = @transform_4, window_bounds = array<i64: 1, 16>}, {pipeline_mode = #tpu.pipeline_mode<synchronous>, transform_indices = @transform_5, window_bounds = array<i64: 16, 128>}, {pipeline_mode = #tpu.pipeline_mode<synchronous>, transform_indices = @transform_6, window_bounds = array<i64: 1, 128>}, {transform_indices = @transform_7, window_bounds = array<i64: 8, 128>}]} {
    %c0 = arith.constant 0 : index
    %c0_0 = arith.constant 0 : index
    %0 = vector.load %arg1[%c0, %c0_0] : memref<8x400xf32, #tpu.memory_space<vmem>>, vector<8x400xf32>
    %1 = arith.truncf %0 : vector<8x400xf32> to vector<8x400xbf16>
    %c0_1 = arith.constant 0 : index
    %c0_2 = arith.constant 0 : index
    %2 = vector.load %arg2[%c0_1, %c0_2] : memref<400x768xbf16, #tpu.memory_space<vmem>>, vector<400x768xbf16>
    %cst = arith.constant dense<0.000000e+00> : vector<8x768xf32>
    %3 = tpu.matmul %1, %2, %cst {dimension_numbers = #tpu.dot_dimension_numbers<[1], [0], [0], [1], [0, 0, 1, 1], [], []>} : vector<8x400xbf16>, vector<400x768xbf16>, vector<8x768xf32> -> vector<8x768xf32>
    %c0_3 = arith.constant 0 : index
    %c0_4 = arith.constant 0 : index
    %4 = vector.load %arg3[%c0_3, %c0_4] : memref<1x768xf32, #tpu.memory_space<vmem>>, vector<1x768xf32>
    %5 = vector.broadcast %4 : vector<1x768xf32> to vector<8x768xf32>
    %6 = arith.addf %3, %5 : vector<8x768xf32>
    %cst_5 = arith.constant 0.000000e+00 : f32
    %7 = vector.broadcast %cst_5 : f32 to vector<8x768xf32>
    %8 = arith.maximumf %6, %7 : vector<8x768xf32>
    %9 = vector.extract_strided_slice %8 {offsets = [0, 0], sizes = [8, 384], strides = [1, 1]} : vector<8x768xf32> to vector<8x384xf32>
    %10 = vector.extract_strided_slice %8 {offsets = [0, 384], sizes = [8, 384], strides = [1, 1]} : vector<8x768xf32> to vector<8x384xf32>
    %11 = arith.maximumf %9, %10 : vector<8x384xf32>
    %12 = arith.truncf %11 : vector<8x384xf32> to vector<8x384xbf16>
    %c0_6 = arith.constant 0 : index
    %c0_7 = arith.constant 0 : index
    %13 = vector.load %arg4[%c0_6, %c0_7] : memref<384x16xbf16, #tpu.memory_space<vmem>>, vector<384x16xbf16>
    %cst_8 = arith.constant dense<0.000000e+00> : vector<8x16xf32>
    %14 = tpu.matmul %12, %13, %cst_8 {dimension_numbers = #tpu.dot_dimension_numbers<[1], [0], [0], [1], [0, 0, 1, 1], [], []>} : vector<8x384xbf16>, vector<384x16xbf16>, vector<8x16xf32> -> vector<8x16xf32>
    %c0_9 = arith.constant 0 : index
    %c0_10 = arith.constant 0 : index
    %15 = vector.load %arg5[%c0_9, %c0_10] : memref<1x16xf32, #tpu.memory_space<vmem>>, vector<1x16xf32>
    %16 = vector.broadcast %15 : vector<1x16xf32> to vector<8x16xf32>
    %17 = arith.addf %14, %16 : vector<8x16xf32>
    %cst_11 = arith.constant 0.000000e+00 : f32
    %18 = vector.broadcast %cst_11 : f32 to vector<8x16xf32>
    %19 = arith.maximumf %17, %18 : vector<8x16xf32>
    %c0_12 = arith.constant 0 : index
    %c0_13 = arith.constant 0 : index
    %20 = vector.load %arg6[%c0_12, %c0_13] : memref<16x128xf32, #tpu.memory_space<vmem>>, vector<16x128xf32>
    %cst_14 = arith.constant dense<0.000000e+00> : vector<8x128xf32>
    %21 = tpu.matmul %19, %20, %cst_14 {dimension_numbers = #tpu.dot_dimension_numbers<[1], [0], [0], [1], [0, 0, 1, 1], [], []>} : vector<8x16xf32>, vector<16x128xf32>, vector<8x128xf32> -> vector<8x128xf32>
    %c0_15 = arith.constant 0 : index
    %c0_16 = arith.constant 0 : index
    %22 = vector.load %arg7[%c0_15, %c0_16] : memref<1x128xf32, #tpu.memory_space<vmem>>, vector<1x128xf32>
    %23 = vector.broadcast %22 : vector<1x128xf32> to vector<8x128xf32>
    %24 = arith.addf %21, %23 : vector<8x128xf32>
    %cst_17 = arith.constant dense<0xFF800000> : vector<8xf32>
    %25 = vector.multi_reduction <maximumf>, %24, %cst_17 [1] : vector<8x128xf32> to vector<8xf32>
    %26 = vector.shape_cast %25 : vector<8xf32> to vector<8x1xf32>
    %27 = vector.broadcast %26 : vector<8x1xf32> to vector<8x128xf32>
    %28 = arith.subf %24, %27 : vector<8x128xf32>
    %29 = math.exp %28 : vector<8x128xf32>
    %cst_18 = arith.constant dense<0.000000e+00> : vector<8xf32>
    %30 = vector.multi_reduction <add>, %29, %cst_18 [1] : vector<8x128xf32> to vector<8xf32>
    %31 = vector.shape_cast %30 : vector<8xf32> to vector<8x1xf32>
    %32 = vector.broadcast %31 : vector<8x1xf32> to vector<8x128xf32>
    %33 = arith.divf %29, %32 : vector<8x128xf32>
    %c0_19 = arith.constant 0 : index
    %c0_20 = arith.constant 0 : index
    %34 = vector.load %arg8[%c0_19, %c0_20] : memref<8x128xf32, #tpu.memory_space<vmem>>, vector<8x128xf32>
    tpu.vector_store %arg8[%c0_19, %c0_20], %33 {strides = array<i32>} : memref<8x128xf32, #tpu.memory_space<vmem>>, vector<8x128xf32>,
    return
  }
  func.func @transform_0(%arg0: i32) -> (i32, i32) {
    %c0_i32 = arith.constant 0 : i32
    %c0_i32_0 = arith.constant 0 : i32
    return %arg0, %c0_i32 : i32, i32
  }
  func.func @transform_1(%arg0: i32) -> (i32, i32) {
    %c0_i32 = arith.constant 0 : i32
    %c0_i32_0 = arith.constant 0 : i32
    %c0_i32_1 = arith.constant 0 : i32
    return %c0_i32, %c0_i32_0 : i32, i32
  }
  func.func @transform_2(%arg0: i32) -> (i32, i32) {
    %c0_i32 = arith.constant 0 : i32
    %c0_i32_0 = arith.constant 0 : i32
    %c0_i32_1 = arith.constant 0 : i32
    return %c0_i32, %c0_i32_0 : i32, i32
  }
  func.func @transform_3(%arg0: i32) -> (i32, i32) {
    %c0_i32 = arith.constant 0 : i32
    %c0_i32_0 = arith.constant 0 : i32
    %c0_i32_1 = arith.constant 0 : i32
    return %c0_i32, %c0_i32_0 : i32, i32
  }
  func.func @transform_4(%arg0: i32) -> (i32, i32) {
    %c0_i32 = arith.constant 0 : i32
    %c0_i32_0 = arith.constant 0 : i32
    %c0_i32_1 = arith.constant 0 : i32
    return %c0_i32, %c0_i32_0 : i32, i32
  }
  func.func @transform_5(%arg0: i32) -> (i32, i32) {
    %c0_i32 = arith.constant 0 : i32
    %c0_i32_0 = arith.constant 0 : i32
    %c0_i32_1 = arith.constant 0 : i32
    return %c0_i32, %c0_i32_0 : i32, i32
  }
  func.func @transform_6(%arg0: i32) -> (i32, i32) {
    %c0_i32 = arith.constant 0 : i32
    %c0_i32_0 = arith.constant 0 : i32
    %c0_i32_1 = arith.constant 0 : i32
    return %c0_i32, %c0_i32_0 : i32, i32
  }
  func.func @transform_7(%arg0: i32) -> (i32, i32) {
    %c0_i32 = arith.constant 0 : i32
    %c0_i32_0 = arith.constant 0 : i32
    return %arg0, %c0_i32 : i32, i32
  }
}

</mosaic_0001>

<llo_original>
// kernel: seq_32x1_16_forward.1
$region0: #{seq_32x1_16_forward.1}
  #allocation0 [shape = 'u32[]', space=smem, size = 0x4, offset = 0x4, fixed_abs, tag = 'smem constant byte address 0x4 - core index']
  #allocation1 [shape = 'u32[144,128]{1,0:T(1,128)}', space=vmem, size = 0x12000, scoped, tag = 'internal scratch']
  %s0 = inlined_call_operand.vmem [shape: f32[8,400], index: 0, kind: input, shape index: {}]
  %s1 = inlined_call_operand.hbm [shape: bf16[400,768], index: 1, kind: input, shape index: {}]
  %s2 = inlined_call_operand.vmem [shape: f32[1,768], index: 2, kind: input, shape index: {}]
  %s3 = inlined_call_operand.vmem [shape: bf16[384,16], index: 3, kind: input, shape index: {}]
  %s4 = inlined_call_operand.vmem [shape: f32[1,16], index: 4, kind: input, shape index: {}]
  %s5 = inlined_call_operand.vmem [shape: f32[16,128], index: 5, kind: input, shape index: {}]
  %s6 = inlined_call_operand.vmem [shape: f32[1,128], index: 6, kind: input, shape index: {}]
  %s7 = inlined_call_operand.vmem [shape: f32[8,128], index: 7, kind: output, shape index: {}]
  %s8 = sld [smem:[#allocation0]]
  $region42: #{seq_32x1_16_forward.1} parent=0
    _
  %s10 = ssub.s32 1, %s8
  %s11 = scalar_select 0, %s10, %s8
  $region1: #{seq_32x1_16_forward.1} parent=0
    #allocation2 [shape = 'u8[614400]{0}', space=vmem, size = 0x96000, scoped, tag = 'input window, operand 1, single buffered']
    #allocation3 [shape = 's32[1]{0}', space=sflag, size = 0x4, scoped, tag = 'scoped memory for seq_32x1_16_forward.1']
    %12 = vsyncpa [#allocation3], 0
    // Predicated region
    $region2: #{seq_32x1_16_forward.1} parent=1 // pred_check
      _
    $region3: #{seq_32x1_16_forward.1} parent=1 // pred_check_branch
      %14 = sbr.rel (0) target = $region5
    $region4: #{seq_32x1_16_forward.1} parent=1 // pred_region
      _
    $region5: #{seq_32x1_16_forward.1} parent=1 // pred_fallthru
      _
    // Predicated region
    $region6: #{seq_32x1_16_forward.1} parent=1 // pred_check
      _
    $region7: #{seq_32x1_16_forward.1} parent=1 // pred_check_branch
      %16 = sbr.rel (0) target = $region9
    $region8: #{seq_32x1_16_forward.1} parent=1 // pred_region
      %s18 = ssub.s32 19200, 19200
      %19 = vsyncadd [#allocation3], %s18
      %s20 = sshll.u32 [#allocation2], 4
      %s21 = int_to_ptr.vmem [resolvable:$true] %s20
      %26 = dma.hbm_to_vmem [thread:$0]  %s1, 19200, %s21, [#allocation3], 384, 384, 24
    $region9: #{seq_32x1_16_forward.1} parent=1 // pred_fallthru
      _
    // Predicated region
    $region10: #{seq_32x1_16_forward.1} parent=1 // pred_check
      _
    $region11: #{seq_32x1_16_forward.1} parent=1 // pred_check_branch
      %28 = sbr.rel (0) target = $region13
    $region12: #{seq_32x1_16_forward.1} parent=1 // pred_region
      _
    $region13: #{seq_32x1_16_forward.1} parent=1 // pred_fallthru
      _
    // Predicated region
    $region14: #{seq_32x1_16_forward.1} parent=1 // pred_check
      _
    $region15: #{seq_32x1_16_forward.1} parent=1 // pred_check_branch
      %30 = sbr.rel (0) target = $region17
    $region16: #{seq_32x1_16_forward.1} parent=1 // pred_region
      _
    $region17: #{seq_32x1_16_forward.1} parent=1 // pred_fallthru
      _
    // Predicated region
    $region18: #{seq_32x1_16_forward.1} parent=1 // pred_check
      _
    $region19: #{seq_32x1_16_forward.1} parent=1 // pred_check_branch
      %32 = sbr.rel (0) target = $region21
    $region20: #{seq_32x1_16_forward.1} parent=1 // pred_region
      _
    $region21: #{seq_32x1_16_forward.1} parent=1 // pred_fallthru
      _
    // Predicated region
    $region22: #{seq_32x1_16_forward.1} parent=1 // pred_check
      _
    $region23: #{seq_32x1_16_forward.1} parent=1 // pred_check_branch
      %34 = sbr.rel (0) target = $region25
    $region24: #{seq_32x1_16_forward.1} parent=1 // pred_region
      _
    $region25: #{seq_32x1_16_forward.1} parent=1 // pred_fallthru
      _
    // Predicated region
    $region26: #{seq_32x1_16_forward.1} parent=1 // pred_check
      _
    $region27: #{seq_32x1_16_forward.1} parent=1 // pred_check_branch
      %36 = sbr.rel (0) target = $region29
    $region28: #{seq_32x1_16_forward.1} parent=1 // pred_region
      _
    $region29: #{seq_32x1_16_forward.1} parent=1 // pred_fallthru
      _
    // Predicated region
    $region30: #{seq_32x1_16_forward.1} parent=1 // pred_check
      _
    $region31: #{seq_32x1_16_forward.1} parent=1 // pred_check_branch
      %38 = sbr.rel (0) target = $region33
    $region32: #{seq_32x1_16_forward.1} parent=1 // pred_region
      %39 = dma.done [#allocation3], 19200
    $region33: #{seq_32x1_16_forward.1} parent=1 // pred_fallthru
      _
    %v41 = vld [vmem:[%s0] sm:$0xff]
    %v42 = vld [vmem:[%s0 + $0x8] sm:$0xff]
    %v43 = vld [vmem:[%s0 + $0x10] sm:$0xff]
    %v44 = vld [vmem:[%s0 + $0x18] sm:$0xff]
    %v45 = vpack.c.bf16 %v41, %v41
    %v46 = vpack.c.bf16 %v42, %v42
    %v47 = vpack.c.bf16 %v43, %v43
    %v48 = vpack.c.bf16 %v44, %v44
    %v49 = vld [vmem:[#allocation2] sm:$0xff]
    %v50 = vld [vmem:[#allocation2 + $0x8] sm:$0xff]
    %v51 = vld [vmem:[#allocation2 + $0x10] sm:$0xff]
    %v52 = vld [vmem:[#allocation2 + $0x18] sm:$0xff]
    %v53 = vld [vmem:[#allocation2 + $0x20] sm:$0xff]
    %v54 = vld [vmem:[#allocation2 + $0x28] sm:$0xff]
    %v55 = vld [vmem:[#allocation2 + $0x30] sm:$0xff]
    %v56 = vld [vmem:[#allocation2 + $0x38] sm:$0xff]
    %v57 = vld [vmem:[#allocation2 + $0x40] sm:$0xff]
    %v58 = vld [vmem:[#allocation2 + $0x48] sm:$0xff]
    %v59 = vld [vmem:[#allocation2 + $0x50] sm:$0xff]
    %v60 = vld [vmem:[#allocation2 + $0x58] sm:$0xff]
    %v61 = vld [vmem:[#allocation2 + $0x60] sm:$0xff]
    %v62 = vld [vmem:[#allocation2 + $0x68] sm:$0xff]
    %v63 = vld [vmem:[#allocation2 + $0x70] sm:$0xff]
    %v64 = vld [vmem:[#allocation2 + $0x78] sm:$0xff]
    %v65 = vld [vmem:[#allocation2 + $0x80] sm:$0xff]
    %v66 = vld [vmem:[#allocation2 + $0x88] sm:$0xff]
    %v67 = vld [vmem:[#allocation2 + $0x90] sm:$0xff]
    %v68 = vld [vmem:[#allocation2 + $0x98] sm:$0xff]
    %v69 = vld [vmem:[#allocation2 + $0xa0] sm:$0xff]
    %v70 = vld [vmem:[#allocation2 + $0xa8] sm:$0xff]
    %v71 = vld [vmem:[#allocation2 + $0xb0] sm:$0xff]
    %v72 = vld [vmem:[#allocation2 + $0xb8] sm:$0xff]
    %v73 = vld [vmem:[#allocation2 + $0xc0] sm:$0xff]
    %v74 = vld [vmem:[#allocation2 + $0xc8] sm:$0xff]
    %v75 = vld [vmem:[#allocation2 + $0xd0] sm:$0xff]
    %v76 = vld [vmem:[#allocation2 + $0xd8] sm:$0xff]
    %v77 = vld [vmem:[#allocation2 + $0xe0] sm:$0xff]
    %v78 = vld [vmem:[#allocation2 + $0xe8] sm:$0xff]
    %v79 = vld [vmem:[#allocation2 + $0xf0] sm:$0xff]
    %v80 = vld [vmem:[#allocation2 + $0xf8] sm:$0xff]
    %v81 = vld [vmem:[#allocation2 + $0x100] sm:$0xff]
    %v82 = vld [vmem:[#allocation2 + $0x108] sm:$0xff]
    %v83 = vld [vmem:[#allocation2 + $0x110] sm:$0xff]
    %v84 = vld [vmem:[#allocation2 + $0x118] sm:$0xff]
    %v85 = vld [vmem:[#allocation2 + $0x120] sm:$0xff]
    %v86 = vld [vmem:[#allocation2 + $0x128] sm:$0xff]
    %v87 = vld [vmem:[#allocation2 + $0x130] sm:$0xff]
    %v88 = vld [vmem:[#allocation2 + $0x138] sm:$0xff]
    %v89 = vld [vmem:[#allocation2 + $0x140] sm:$0xff]
    %v90 = vld [vmem:[#allocation2 + $0x148] sm:$0xff]
    %v91 = vld [vmem:[#allocation2 + $0x150] sm:$0xff]
    %v92 = vld [vmem:[#allocation2 + $0x158] sm:$0xff]
    %v93 = vld [vmem:[#allocation2 + $0x160] sm:$0xff]
    %v94 = vld [vmem:[#allocation2 + $0x168] sm:$0xff]
    %v95 = vld [vmem:[#allocation2 + $0x170] sm:$0xff]
    %v96 = vld [vmem:[#allocation2 + $0x178] sm:$0xff]
    %v97 = vld [vmem:[#allocation2 + $0x180] sm:$0xff]
    %v98 = vld [vmem:[#allocation2 + $0x188] sm:$0xff]
    %v99 = vld [vmem:[#allocation2 + $0x190] sm:$0xff]
    %v100 = vld [vmem:[#allocation2 + $0x198] sm:$0xff]
    %v101 = vld [vmem:[#allocation2 + $0x1a0] sm:$0xff]
    %v102 = vld [vmem:[#allocation2 + $0x1a8] sm:$0xff]
    %v103 = vld [vmem:[#allocation2 + $0x1b0] sm:$0xff]
    %v104 = vld [vmem:[#allocation2 + $0x1b8] sm:$0xff]
    %v105 = vld [vmem:[#allocation2 + $0x1c0] sm:$0xff]
    %v106 = vld [vmem:[#allocation2 + $0x1c8] sm:$0xff]
    %v107 = vld [vmem:[#allocation2 + $0x1d0] sm:$0xff]
    %v108 = vld [vmem:[#allocation2 + $0x1d8] sm:$0xff]
    %v109 = vld [vmem:[#allocation2 + $0x1e0] sm:$0xff]
    %v110 = vld [vmem:[#allocation2 + $0x1e8] sm:$0xff]
    %v111 = vld [vmem:[#allocation2 + $0x1f0] sm:$0xff]
    %v112 = vld [vmem:[#allocation2 + $0x1f8] sm:$0xff]
    %v113 = vld [vmem:[#allocation2 + $0x200] sm:$0xff]
    %v114 = vld [vmem:[#allocation2 + $0x208] sm:$0xff]
    %v115 = vld [vmem:[#allocation2 + $0x210] sm:$0xff]
    %v116 = vld [vmem:[#allocation2 + $0x218] sm:$0xff]
    %v117 = vld [vmem:[#allocation2 + $0x220] sm:$0xff]
    %v118 = vld [vmem:[#allocation2 + $0x228] sm:$0xff]
    %v119 = vld [vmem:[#allocation2 + $0x230] sm:$0xff]
    %v120 = vld [vmem:[#allocation2 + $0x238] sm:$0xff]
    %v121 = vld [vmem:[#allocation2 + $0x240] sm:$0xff]
    %v122 = vld [vmem:[#allocation2 + $0x248] sm:$0xff]
    %v123 = vld [vmem:[#allocation2 + $0x250] sm:$0xff]
    %v124 = vld [vmem:[#allocation2 + $0x258] sm:$0xff]
    %v125 = vld [vmem:[#allocation2 + $0x260] sm:$0xff]
    %v126 = vld [vmem:[#allocation2 + $0x268] sm:$0xff]
    %v127 = vld [vmem:[#allocation2 + $0x270] sm:$0xff]
    %v128 = vld [vmem:[#allocation2 + $0x278] sm:$0xff]
    %v129 = vld [vmem:[#allocation2 + $0x280] sm:$0xff]
    %v130 = vld [vmem:[#allocation2 + $0x288] sm:$0xff]
    %v131 = vld [vmem:[#allocation2 + $0x290] sm:$0xff]
    %v132 = vld [vmem:[#allocation2 + $0x298] sm:$0xff]
    %v133 = vld [vmem:[#allocation2 + $0x2a0] sm:$0xff]
    %v134 = vld [vmem:[#allocation2 + $0x2a8] sm:$0xff]
    %v135 = vld [vmem:[#allocation2 + $0x2b0] sm:$0xff]
    %v136 = vld [vmem:[#allocation2 + $0x2b8] sm:$0xff]
    %v137 = vld [vmem:[#allocation2 + $0x2c0] sm:$0xff]
    %v138 = vld [vmem:[#allocation2 + $0x2c8] sm:$0xff]
    %v139 = vld [vmem:[#allocation2 + $0x2d0] sm:$0xff]
    %v140 = vld [vmem:[#allocation2 + $0x2d8] sm:$0xff]
    %v141 = vld [vmem:[#allocation2 + $0x2e0] sm:$0xff]
    %v142 = vld [vmem:[#allocation2 + $0x2e8] sm:$0xff]
    %v143 = vld [vmem:[#allocation2 + $0x2f0] sm:$0xff]
    %v144 = vld [vmem:[#allocation2 + $0x2f8] sm:$0xff]
    %v145 = vld [vmem:[#allocation2 + $0x300] sm:$0xff]
    %v146 = vld [vmem:[#allocation2 + $0x308] sm:$0xff]
    %v147 = vld [vmem:[#allocation2 + $0x310] sm:$0xff]
    %v148 = vld [vmem:[#allocation2 + $0x318] sm:$0xff]
    %v149 = vld [vmem:[#allocation2 + $0x320] sm:$0xff]
    %v150 = vld [vmem:[#allocation2 + $0x328] sm:$0xff]
    %v151 = vld [vmem:[#allocation2 + $0x330] sm:$0xff]
    %v152 = vld [vmem:[#allocation2 + $0x338] sm:$0xff]
    %v153 = vld [vmem:[#allocation2 + $0x340] sm:$0xff]
    %v154 = vld [vmem:[#allocation2 + $0x348] sm:$0xff]
    %v155 = vld [vmem:[#allocation2 + $0x350] sm:$0xff]
    %v156 = vld [vmem:[#allocation2 + $0x358] sm:$0xff]
    %v157 = vld [vmem:[#allocation2 + $0x360] sm:$0xff]
    %v158 = vld [vmem:[#allocation2 + $0x368] sm:$0xff]
    %v159 = vld [vmem:[#allocation2 + $0x370] sm:$0xff]
    %v160 = vld [vmem:[#allocation2 + $0x378] sm:$0xff]
    %v161 = vld [vmem:[#allocation2 + $0x380] sm:$0xff]
    %v162 = vld [vmem:[#allocation2 + $0x388] sm:$0xff]
    %v163 = vld [vmem:[#allocation2 + $0x390] sm:$0xff]
    %v164 = vld [vmem:[#allocation2 + $0x398] sm:$0xff]
    %v165 = vld [vmem:[#allocation2 + $0x3a0] sm:$0xff]
    %v166 = vld [vmem:[#allocation2 + $0x3a8] sm:$0xff]
    %v167 = vld [vmem:[#allocation2 + $0x3b0] sm:$0xff]
    %v168 = vld [vmem:[#allocation2 + $0x3b8] sm:$0xff]
    %v169 = vld [vmem:[#allocation2 + $0x3c0] sm:$0xff]
    %v170 = vld [vmem:[#allocation2 + $0x3c8] sm:$0xff]
    %v171 = vld [vmem:[#allocation2 + $0x3d0] sm:$0xff]
    %v172 = vld [vmem:[#allocation2 + $0x3d8] sm:$0xff]
    %v173 = vld [vmem:[#allocation2 + $0x3e0] sm:$0xff]
    %v174 = vld [vmem:[#allocation2 + $0x3e8] sm:$0xff]
    %v175 = vld [vmem:[#allocation2 + $0x3f0] sm:$0xff]
    %v176 = vld [vmem:[#allocation2 + $0x3f8] sm:$0xff]
    %v177 = vld [vmem:[#allocation2 + $0x400] sm:$0xff]
    %v178 = vld [vmem:[#allocation2 + $0x408] sm:$0xff]
    %v179 = vld [vmem:[#allocation2 + $0x410] sm:$0xff]
    %v180 = vld [vmem:[#allocation2 + $0x418] sm:$0xff]
    %v181 = vld [vmem:[#allocation2 + $0x420] sm:$0xff]
    %v182 = vld [vmem:[#allocation2 + $0x428] sm:$0xff]
    %v183 = vld [vmem:[#allocation2 + $0x430] sm:$0xff]
    %v184 = vld [vmem:[#allocation2 + $0x438] sm:$0xff]
    %v185 = vld [vmem:[#allocation2 + $0x440] sm:$0xff]
    %v186 = vld [vmem:[#allocation2 + $0x448] sm:$0xff]
    %v187 = vld [vmem:[#allocation2 + $0x450] sm:$0xff]
    %v188 = vld [vmem:[#allocation2 + $0x458] sm:$0xff]
    %v189 = vld [vmem:[#allocation2 + $0x460] sm:$0xff]
    %v190 = vld [vmem:[#allocation2 + $0x468] sm:$0xff]
    %v191 = vld [vmem:[#allocation2 + $0x470] sm:$0xff]
    %v192 = vld [vmem:[#allocation2 + $0x478] sm:$0xff]
    %v193 = vld [vmem:[#allocation2 + $0x480] sm:$0xff]
    %v194 = vld [vmem:[#allocation2 + $0x488] sm:$0xff]
    %v195 = vld [vmem:[#allocation2 + $0x490] sm:$0xff]
    %v196 = vld [vmem:[#allocation2 + $0x498] sm:$0xff]
    %v197 = vld [vmem:[#allocation2 + $0x4a0] sm:$0xff]
    %v198 = vld [vmem:[#allocation2 + $0x4a8] sm:$0xff]
    %v199 = vld [vmem:[%s2] sm:$0x3f]
    %v201 = vlaneseq
    %v202 = vshrl.u32 %v201, 7
    %v203 = vsub.s32 0, %v202
    %v204 = vrot.slane %v199, %v203
    %v205 = vlaneseq
    %v206 = vshrl.u32 %v205, 7
    %v207 = vsub.s32 1, %v206
    %v208 = vrot.slane %v199, %v207
    %v209 = vlaneseq
    %v210 = vshrl.u32 %v209, 7
    %v211 = vsub.s32 2, %v210
    %v212 = vrot.slane %v199, %v211
    %v213 = vlaneseq
    %v214 = vshrl.u32 %v213, 7
    %v215 = vsub.s32 3, %v214
    %v216 = vrot.slane %v199, %v215
    %v217 = vlaneseq
    %v218 = vshrl.u32 %v217, 7
    %v219 = vsub.s32 4, %v218
    %v220 = vrot.slane %v199, %v219
    %v221 = vlaneseq
    %v222 = vshrl.u32 %v221, 7
    %v223 = vsub.s32 5, %v222
    %v224 = vrot.slane %v199, %v223
    %v381 = vunpack.c.l.b16 %v49
    %v382 = vunpack.c.h.b16 %v49
    %v383 = vunpack.c.l.b16 %v50
    %v384 = vunpack.c.h.b16 %v50
    %v385 = vunpack.c.l.b16 %v51
    %v386 = vunpack.c.h.b16 %v51
    %v387 = vunpack.c.l.b16 %v52
    %v388 = vunpack.c.h.b16 %v52
    %v389 = vunpack.c.l.b16 %v53
    %v390 = vunpack.c.h.b16 %v53
    %v391 = vunpack.c.l.b16 %v54
    %v392 = vunpack.c.h.b16 %v54
    %v393 = vunpack.c.l.b16 %v55
    %v394 = vunpack.c.h.b16 %v55
    %v395 = vunpack.c.l.b16 %v56
    %v396 = vunpack.c.h.b16 %v56
    %v397 = vunpack.c.l.b16 %v57
    %v398 = vunpack.c.h.b16 %v57
    %v399 = vunpack.c.l.b16 %v58
    %v400 = vunpack.c.h.b16 %v58
    %v401 = vunpack.c.l.b16 %v59
    %v402 = vunpack.c.h.b16 %v59
    %v403 = vunpack.c.l.b16 %v60
    %v404 = vunpack.c.h.b16 %v60
    %v405 = vunpack.c.l.b16 %v61
    %v406 = vunpack.c.h.b16 %v61
    %v407 = vunpack.c.l.b16 %v62
    %v408 = vunpack.c.h.b16 %v62
    %v409 = vunpack.c.l.b16 %v63
    %v410 = vunpack.c.h.b16 %v63
    %v411 = vunpack.c.l.b16 %v64
    %v412 = vunpack.c.h.b16 %v64
    %v413 = vunpack.c.l.b16 %v65
    %v414 = vunpack.c.h.b16 %v65
    %v415 = vunpack.c.l.b16 %v66
    %v416 = vunpack.c.h.b16 %v66
    %v417 = vunpack.c.l.b16 %v67
    %v418 = vunpack.c.h.b16 %v67
    %v419 = vunpack.c.l.b16 %v68
    %v420 = vunpack.c.h.b16 %v68
    %v421 = vunpack.c.l.b16 %v69
    %v422 = vunpack.c.h.b16 %v69
    %v423 = vunpack.c.l.b16 %v70
    %v424 = vunpack.c.h.b16 %v70
    %v425 = vunpack.c.l.b16 %v71
    %v426 = vunpack.c.h.b16 %v71
    %v427 = vunpack.c.l.b16 %v72
    %v428 = vunpack.c.h.b16 %v72
    %v429 = vunpack.c.l.b16 %v73
    %v430 = vunpack.c.h.b16 %v73
    %v431 = vunpack.c.l.b16 %v74
    %v432 = vunpack.c.h.b16 %v74
    %v433 = vunpack.c.l.b16 %v75
    %v434 = vunpack.c.h.b16 %v75
    %v435 = vunpack.c.l.b16 %v76
    %v436 = vunpack.c.h.b16 %v76
    %v437 = vunpack.c.l.b16 %v77
    %v438 = vunpack.c.h.b16 %v77
    %v439 = vunpack.c.l.b16 %v78
    %v440 = vunpack.c.h.b16 %v78
    %v441 = vunpack.c.l.b16 %v79
    %v442 = vunpack.c.h.b16 %v79
    %v443 = vunpack.c.l.b16 %v80
    %v444 = vunpack.c.h.b16 %v80
    %v445 = vunpack.c.l.b16 %v81
    %v446 = vunpack.c.h.b16 %v81
    %v447 = vunpack.c.l.b16 %v82
    %v448 = vunpack.c.h.b16 %v82
    %v449 = vunpack.c.l.b16 %v83
    %v450 = vunpack.c.h.b16 %v83
    %v451 = vunpack.c.l.b16 %v84
    %v452 = vunpack.c.h.b16 %v84
    %v453 = vunpack.c.l.b16 %v85
    %v454 = vunpack.c.h.b16 %v85
    %v455 = vunpack.c.l.b16 %v86
    %v456 = vunpack.c.h.b16 %v86
    %v457 = vunpack.c.l.b16 %v87
    %v458 = vunpack.c.h.b16 %v87
    %v459 = vunpack.c.l.b16 %v88
    %v460 = vunpack.c.h.b16 %v88
    %v461 = vunpack.c.l.b16 %v89
    %v462 = vunpack.c.h.b16 %v89
    %v463 = vunpack.c.l.b16 %v90
    %v464 = vunpack.c.h.b16 %v90
    %v465 = vunpack.c.l.b16 %v91
    %v466 = vunpack.c.h.b16 %v91
    %v467 = vunpack.c.l.b16 %v92
    %v468 = vunpack.c.h.b16 %v92
    %v469 = vunpack.c.l.b16 %v93
    %v470 = vunpack.c.h.b16 %v93
    %v471 = vunpack.c.l.b16 %v94
    %v472 = vunpack.c.h.b16 %v94
    %v473 = vunpack.c.l.b16 %v95
    %v474 = vunpack.c.h.b16 %v95
    %v475 = vunpack.c.l.b16 %v96
    %v476 = vunpack.c.h.b16 %v96
    %v477 = vunpack.c.l.b16 %v97
    %v478 = vunpack.c.h.b16 %v97
    %v479 = vunpack.c.l.b16 %v98
    %v480 = vunpack.c.h.b16 %v98
    %v481 = vunpack.c.l.b16 %v99
    %v482 = vunpack.c.h.b16 %v99
    %v483 = vunpack.c.l.b16 %v100
    %v484 = vunpack.c.h.b16 %v100
    %v485 = vunpack.c.l.b16 %v101
    %v486 = vunpack.c.h.b16 %v101
    %v487 = vunpack.c.l.b16 %v102
    %v488 = vunpack.c.h.b16 %v102
    %v489 = vunpack.c.l.b16 %v103
    %v490 = vunpack.c.h.b16 %v103
    %v491 = vunpack.c.l.b16 %v104
    %v492 = vunpack.c.h.b16 %v104
    %v493 = vunpack.c.l.b16 %v105
    %v494 = vunpack.c.h.b16 %v105
    %v495 = vunpack.c.l.b16 %v106
    %v496 = vunpack.c.h.b16 %v106
    %v497 = vunpack.c.l.b16 %v107
    %v498 = vunpack.c.h.b16 %v107
    %v499 = vunpack.c.l.b16 %v108
    %v500 = vunpack.c.h.b16 %v108
    %v501 = vunpack.c.l.b16 %v109
    %v502 = vunpack.c.h.b16 %v109
    %v503 = vunpack.c.l.b16 %v110
    %v504 = vunpack.c.h.b16 %v110
    %v505 = vunpack.c.l.b16 %v111
    %v506 = vunpack.c.h.b16 %v111
    %v507 = vunpack.c.l.b16 %v112
    %v508 = vunpack.c.h.b16 %v112
    %v509 = vunpack.c.l.b16 %v113
    %v510 = vunpack.c.h.b16 %v113
    %v511 = vunpack.c.l.b16 %v114
    %v512 = vunpack.c.h.b16 %v114
    %v513 = vunpack.c.l.b16 %v115
    %v514 = vunpack.c.h.b16 %v115
    %v515 = vunpack.c.l.b16 %v116
    %v516 = vunpack.c.h.b16 %v116
    %v517 = vunpack.c.l.b16 %v117
    %v518 = vunpack.c.h.b16 %v117
    %v519 = vunpack.c.l.b16 %v118
    %v520 = vunpack.c.h.b16 %v118
    %v521 = vunpack.c.l.b16 %v119
    %v522 = vunpack.c.h.b16 %v119
    %v523 = vunpack.c.l.b16 %v120
    %v524 = vunpack.c.h.b16 %v120
    %v525 = vunpack.c.l.b16 %v121
    %v526 = vunpack.c.h.b16 %v121
    %v527 = vunpack.c.l.b16 %v122
    %v528 = vunpack.c.h.b16 %v122
    %v529 = vunpack.c.l.b16 %v123
    %v530 = vunpack.c.h.b16 %v123
    %v531 = vunpack.c.l.b16 %v124
    %v532 = vunpack.c.h.b16 %v124
    %v533 = vunpack.c.l.b16 %v125
    %v534 = vunpack.c.h.b16 %v125
    %v535 = vunpack.c.l.b16 %v126
    %v536 = vunpack.c.h.b16 %v126
    %v537 = vunpack.c.l.b16 %v127
    %v538 = vunpack.c.h.b16 %v127
    %v539 = vunpack.c.l.b16 %v128
    %v540 = vunpack.c.h.b16 %v128
    %v541 = vunpack.c.l.b16 %v129
    %v542 = vunpack.c.h.b16 %v129
    %v543 = vunpack.c.l.b16 %v130
    %v544 = vunpack.c.h.b16 %v130
    %v545 = vunpack.c.l.b16 %v131
    %v546 = vunpack.c.h.b16 %v131
    %v547 = vunpack.c.l.b16 %v132
    %v548 = vunpack.c.h.b16 %v132
    %v549 = vunpack.c.l.b16 %v133
    %v550 = vunpack.c.h.b16 %v133
    %v551 = vunpack.c.l.b16 %v134
    %v552 = vunpack.c.h.b16 %v134
    %v553 = vunpack.c.l.b16 %v135
    %v554 = vunpack.c.h.b16 %v135
    %v555 = vunpack.c.l.b16 %v136
    %v556 = vunpack.c.h.b16 %v136
    %v557 = vunpack.c.l.b16 %v137
    %v558 = vunpack.c.h.b16 %v137
    %v559 = vunpack.c.l.b16 %v138
    %v560 = vunpack.c.h.b16 %v138
    %v561 = vunpack.c.l.b16 %v139
    %v562 = vunpack.c.h.b16 %v139
    %v563 = vunpack.c.l.b16 %v140
    %v564 = vunpack.c.h.b16 %v140
    %v565 = vunpack.c.l.b16 %v141
    %v566 = vunpack.c.h.b16 %v141
    %v567 = vunpack.c.l.b16 %v142
    %v568 = vunpack.c.h.b16 %v142
    %v569 = vunpack.c.l.b16 %v143
    %v570 = vunpack.c.h.b16 %v143
    %v571 = vunpack.c.l.b16 %v144
    %v572 = vunpack.c.h.b16 %v144
    %v573 = vunpack.c.l.b16 %v145
    %v574 = vunpack.c.h.b16 %v145
    %v575 = vunpack.c.l.b16 %v146
    %v576 = vunpack.c.h.b16 %v146
    %v577 = vunpack.c.l.b16 %v147
    %v578 = vunpack.c.h.b16 %v147
    %v579 = vunpack.c.l.b16 %v148
    %v580 = vunpack.c.h.b16 %v148
    %v581 = vunpack.c.l.b16 %v149
    %v582 = vunpack.c.h.b16 %v149
    %v583 = vunpack.c.l.b16 %v150
    %v584 = vunpack.c.h.b16 %v150
    %v585 = vunpack.c.l.b16 %v151
    %v586 = vunpack.c.h.b16 %v151
    %v587 = vunpack.c.l.b16 %v152
    %v588 = vunpack.c.h.b16 %v152
    %v589 = vunpack.c.l.b16 %v153
    %v590 = vunpack.c.h.b16 %v153
    %v591 = vunpack.c.l.b16 %v154
    %v592 = vunpack.c.h.b16 %v154
    %v593 = vunpack.c.l.b16 %v155
    %v594 = vunpack.c.h.b16 %v155
    %v595 = vunpack.c.l.b16 %v156
    %v596 = vunpack.c.h.b16 %v156
    %v597 = vunpack.c.l.b16 %v157
    %v598 = vunpack.c.h.b16 %v157
    %v599 = vunpack.c.l.b16 %v158
    %v600 = vunpack.c.h.b16 %v158
    %v601 = vunpack.c.l.b16 %v159
    %v602 = vunpack.c.h.b16 %v159
    %v603 = vunpack.c.l.b16 %v160
    %v604 = vunpack.c.h.b16 %v160
    %v605 = vunpack.c.l.b16 %v161
    %v606 = vunpack.c.h.b16 %v161
    %v607 = vunpack.c.l.b16 %v162
    %v608 = vunpack.c.h.b16 %v162
    %v609 = vunpack.c.l.b16 %v163
    %v610 = vunpack.c.h.b16 %v163
    %v611 = vunpack.c.l.b16 %v164
    %v612 = vunpack.c.h.b16 %v164
    %v613 = vunpack.c.l.b16 %v165
    %v614 = vunpack.c.h.b16 %v165
    %v615 = vunpack.c.l.b16 %v166
    %v616 = vunpack.c.h.b16 %v166
    %v617 = vunpack.c.l.b16 %v167
    %v618 = vunpack.c.h.b16 %v167
    %v619 = vunpack.c.l.b16 %v168
    %v620 = vunpack.c.h.b16 %v168
    %v621 = vunpack.c.l.b16 %v169
    %v622 = vunpack.c.h.b16 %v169
    %v623 = vunpack.c.l.b16 %v170
    %v624 = vunpack.c.h.b16 %v170
    %v625 = vunpack.c.l.b16 %v171
    %v626 = vunpack.c.h.b16 %v171
    %v627 = vunpack.c.l.b16 %v172
    %v628 = vunpack.c.h.b16 %v172
    %v629 = vunpack.c.l.b16 %v173
    %v630 = vunpack.c.h.b16 %v173
    %v631 = vunpack.c.l.b16 %v174
    %v632 = vunpack.c.h.b16 %v174
    %v633 = vunpack.c.l.b16 %v175
    %v634 = vunpack.c.h.b16 %v175
    %v635 = vunpack.c.l.b16 %v176
    %v636 = vunpack.c.h.b16 %v176
    %v637 = vunpack.c.l.b16 %v177
    %v638 = vunpack.c.h.b16 %v177
    %v639 = vunpack.c.l.b16 %v178
    %v640 = vunpack.c.h.b16 %v178
    %v641 = vunpack.c.l.b16 %v179
    %v642 = vunpack.c.h.b16 %v179
    %v643 = vunpack.c.l.b16 %v180
    %v644 = vunpack.c.h.b16 %v180
    %v645 = vunpack.c.l.b16 %v181
    %v646 = vunpack.c.h.b16 %v181
    %v647 = vunpack.c.l.b16 %v182
    %v648 = vunpack.c.h.b16 %v182
    %v649 = vunpack.c.l.b16 %v183
    %v650 = vunpack.c.h.b16 %v183
    %v651 = vunpack.c.l.b16 %v184
    %v652 = vunpack.c.h.b16 %v184
    %v653 = vunpack.c.l.b16 %v185
    %v654 = vunpack.c.h.b16 %v185
    %v655 = vunpack.c.l.b16 %v186
    %v656 = vunpack.c.h.b16 %v186
    %v657 = vunpack.c.l.b16 %v187
    %v658 = vunpack.c.h.b16 %v187
    %v659 = vunpack.c.l.b16 %v188
    %v660 = vunpack.c.h.b16 %v188
    %v661 = vunpack.c.l.b16 %v189
    %v662 = vunpack.c.h.b16 %v189
    %v663 = vunpack.c.l.b16 %v190
    %v664 = vunpack.c.h.b16 %v190
    %v665 = vunpack.c.l.b16 %v191
    %v666 = vunpack.c.h.b16 %v191
    %v667 = vunpack.c.l.b16 %v192
    %v668 = vunpack.c.h.b16 %v192
    %v669 = vunpack.c.l.b16 %v193
    %v670 = vunpack.c.h.b16 %v193
    %v671 = vunpack.c.l.b16 %v194
    %v672 = vunpack.c.h.b16 %v194
    %v673 = vunpack.c.l.b16 %v195
    %v674 = vunpack.c.h.b16 %v195
    %v675 = vunpack.c.l.b16 %v196
    %v676 = vunpack.c.h.b16 %v196
    %v677 = vunpack.c.l.b16 %v197
    %v678 = vunpack.c.h.b16 %v197
    %v679 = vunpack.c.l.b16 %v198
    %v680 = vunpack.c.h.b16 %v198
    %v681 = vpack.c.b16 %v387, %v381
    %v682 = vpack.c.b16 %v388, %v382
    %v683 = vpack.c.b16 %v389, %v383
    %v684 = vpack.c.b16 %v390, %v384
    %v685 = vpack.c.b16 %v391, %v385
    %v686 = vpack.c.b16 %v392, %v386
    %v687 = vpack.c.b16 %v399, %v393
    %v688 = vpack.c.b16 %v400, %v394
    %v689 = vpack.c.b16 %v401, %v395
    %v690 = vpack.c.b16 %v402, %v396
    %v691 = vpack.c.b16 %v403, %v397
    %v692 = vpack.c.b16 %v404, %v398
    %v693 = vpack.c.b16 %v411, %v405
    %v694 = vpack.c.b16 %v412, %v406
    %v695 = vpack.c.b16 %v413, %v407
    %v696 = vpack.c.b16 %v414, %v408
    %v697 = vpack.c.b16 %v415, %v409
    %v698 = vpack.c.b16 %v416, %v410
    %v699 = vpack.c.b16 %v423, %v417
    %v700 = vpack.c.b16 %v424, %v418
    %v701 = vpack.c.b16 %v425, %v419
    %v702 = vpack.c.b16 %v426, %v420
    %v703 = vpack.c.b16 %v427, %v421
    %v704 = vpack.c.b16 %v428, %v422
    %v705 = vpack.c.b16 %v435, %v429
    %v706 = vpack.c.b16 %v436, %v430
    %v707 = vpack.c.b16 %v437, %v431
    %v708 = vpack.c.b16 %v438, %v432
    %v709 = vpack.c.b16 %v439, %v433
    %v710 = vpack.c.b16 %v440, %v434
    %v711 = vpack.c.b16 %v447, %v441
    %v712 = vpack.c.b16 %v448, %v442
    %v713 = vpack.c.b16 %v449, %v443
    %v714 = vpack.c.b16 %v450, %v444
    %v715 = vpack.c.b16 %v451, %v445
    %v716 = vpack.c.b16 %v452, %v446
    %v717 = vpack.c.b16 %v459, %v453
    %v718 = vpack.c.b16 %v460, %v454
    %v719 = vpack.c.b16 %v461, %v455
    %v720 = vpack.c.b16 %v462, %v456
    %v721 = vpack.c.b16 %v463, %v457
    %v722 = vpack.c.b16 %v464, %v458
    %v723 = vpack.c.b16 %v471, %v465
    %v724 = vpack.c.b16 %v472, %v466
    %v725 = vpack.c.b16 %v473, %v467
    %v726 = vpack.c.b16 %v474, %v468
    %v727 = vpack.c.b16 %v475, %v469
    %v728 = vpack.c.b16 %v476, %v470
    %v729 = vpack.c.b16 %v483, %v477
    %v730 = vpack.c.b16 %v484, %v478
    %v731 = vpack.c.b16 %v485, %v479
    %v732 = vpack.c.b16 %v486, %v480
    %v733 = vpack.c.b16 %v487, %v481
    %v734 = vpack.c.b16 %v488, %v482
    %v735 = vpack.c.b16 %v495, %v489
    %v736 = vpack.c.b16 %v496, %v490
    %v737 = vpack.c.b16 %v497, %v491
    %v738 = vpack.c.b16 %v498, %v492
    %v739 = vpack.c.b16 %v499, %v493
    %v740 = vpack.c.b16 %v500, %v494
    %v741 = vpack.c.b16 %v507, %v501
    %v742 = vpack.c.b16 %v508, %v502
    %v743 = vpack.c.b16 %v509, %v503
    %v744 = vpack.c.b16 %v510, %v504
    %v745 = vpack.c.b16 %v511, %v505
    %v746 = vpack.c.b16 %v512, %v506
    %v747 = vpack.c.b16 %v519, %v513
    %v748 = vpack.c.b16 %v520, %v514
    %v749 = vpack.c.b16 %v521, %v515
    %v750 = vpack.c.b16 %v522, %v516
    %v751 = vpack.c.b16 %v523, %v517
    %v752 = vpack.c.b16 %v524, %v518
    %v753 = vpack.c.b16 %v531, %v525
    %v754 = vpack.c.b16 %v532, %v526
    %v755 = vpack.c.b16 %v533, %v527
    %v756 = vpack.c.b16 %v534, %v528
    %v757 = vpack.c.b16 %v535, %v529
    %v758 = vpack.c.b16 %v536, %v530
    %v759 = vpack.c.b16 %v543, %v537
    %v760 = vpack.c.b16 %v544, %v538
    %v761 = vpack.c.b16 %v545, %v539
    %v762 = vpack.c.b16 %v546, %v540
    %v763 = vpack.c.b16 %v547, %v541
    %v764 = vpack.c.b16 %v548, %v542
    %v765 = vpack.c.b16 %v555, %v549
    %v766 = vpack.c.b16 %v556, %v550
    %v767 = vpack.c.b16 %v557, %v551
    %v768 = vpack.c.b16 %v558, %v552
    %v769 = vpack.c.b16 %v559, %v553
    %v770 = vpack.c.b16 %v560, %v554
    %v771 = vpack.c.b16 %v567, %v561
    %v772 = vpack.c.b16 %v568, %v562
    %v773 = vpack.c.b16 %v569, %v563
    %v774 = vpack.c.b16 %v570, %v564
    %v775 = vpack.c.b16 %v571, %v565
    %v776 = vpack.c.b16 %v572, %v566
    %v777 = vpack.c.b16 %v579, %v573
    %v778 = vpack.c.b16 %v580, %v574
    %v779 = vpack.c.b16 %v581, %v575
    %v780 = vpack.c.b16 %v582, %v576
    %v781 = vpack.c.b16 %v583, %v577
    %v782 = vpack.c.b16 %v584, %v578
    %v783 = vpack.c.b16 %v591, %v585
    %v784 = vpack.c.b16 %v592, %v586
    %v785 = vpack.c.b16 %v593, %v587
    %v786 = vpack.c.b16 %v594, %v588
    %v787 = vpack.c.b16 %v595, %v589
    %v788 = vpack.c.b16 %v596, %v590
    %v789 = vpack.c.b16 %v603, %v597
    %v790 = vpack.c.b16 %v604, %v598
    %v791 = vpack.c.b16 %v605, %v599
    %v792 = vpack.c.b16 %v606, %v600
    %v793 = vpack.c.b16 %v607, %v601
    %v794 = vpack.c.b16 %v608, %v602
    %v795 = vpack.c.b16 %v615, %v609
    %v796 = vpack.c.b16 %v616, %v610
    %v797 = vpack.c.b16 %v617, %v611
    %v798 = vpack.c.b16 %v618, %v612
    %v799 = vpack.c.b16 %v619, %v613
    %v800 = vpack.c.b16 %v620, %v614
    %v801 = vpack.c.b16 %v627, %v621
    %v802 = vpack.c.b16 %v628, %v622
    %v803 = vpack.c.b16 %v629, %v623
    %v804 = vpack.c.b16 %v630, %v624
    %v805 = vpack.c.b16 %v631, %v625
    %v806 = vpack.c.b16 %v632, %v626
    %v807 = vpack.c.b16 %v639, %v633
    %v808 = vpack.c.b16 %v640, %v634
    %v809 = vpack.c.b16 %v641, %v635
    %v810 = vpack.c.b16 %v642, %v636
    %v811 = vpack.c.b16 %v643, %v637
    %v812 = vpack.c.b16 %v644, %v638
    %v813 = vpack.c.b16 %v651, %v645
    %v814 = vpack.c.b16 %v652, %v646
    %v815 = vpack.c.b16 %v653, %v647
    %v816 = vpack.c.b16 %v654, %v648
    %v817 = vpack.c.b16 %v655, %v649
    %v818 = vpack.c.b16 %v656, %v650
    %v819 = vpack.c.b16 %v663, %v657
    %v820 = vpack.c.b16 %v664, %v658
    %v821 = vpack.c.b16 %v665, %v659
    %v822 = vpack.c.b16 %v666, %v660
    %v823 = vpack.c.b16 %v667, %v661
    %v824 = vpack.c.b16 %v668, %v662
    %v825 = vpack.c.b16 %v675, %v669
    %v826 = vpack.c.b16 %v676, %v670
    %v827 = vpack.c.b16 %v677, %v671
    %v828 = vpack.c.b16 %v678, %v672
    %v829 = vpack.c.b16 %v679, %v673
    %v830 = vpack.c.b16 %v680, %v674
    %vm981 = vcmask 130048
    %v983 = vsel %vm981, %v48, 0
    %985 = vmatprep.subr.bf16.mxu0 %v682
    %986 = vmatpush1.bf16.msra.mxu0 %v681
    %987 = vmatprep.subr.bf16.mxu0 %v688
    %988 = vmatpush1.bf16.msra.mxu0 %v687
    %989 = vmatprep.subr.bf16.mxu0 %v694
    %990 = vmatpush1.bf16.msra.mxu0 %v693
    %991 = vmatprep.subr.bf16.mxu0 %v700
    %992 = vmatpush1.bf16.msra.mxu0 %v699
    %993 = vmatprep.subr.bf16.mxu0 %v706
    %994 = vmatpush1.bf16.msra.mxu0 %v705
    %995 = vmatprep.subr.bf16.mxu0 %v712
    %996 = vmatpush1.bf16.msra.mxu0 %v711
    %997 = vmatprep.subr.bf16.mxu0 %v718
    %998 = vmatpush1.bf16.msra.mxu0 %v717
    %999 = vmatprep.subr.bf16.mxu0 %v724
    %1000 = vmatpush1.bf16.msra.mxu0 %v723
    %1001 = vmatprep.subr.bf16.mxu0 %v730
    %1002 = vmatpush1.bf16.msra.mxu0 %v729
    %1003 = vmatprep.subr.bf16.mxu0 %v736
    %1004 = vmatpush1.bf16.msra.mxu0 %v735
    %1005 = vmatprep.subr.bf16.mxu0 %v742
    %1006 = vmatpush1.bf16.msra.mxu0 %v741
    %1007 = vmatprep.subr.bf16.mxu0 %v748
    %1008 = vmatpush1.bf16.msra.mxu0 %v747
    %1009 = vmatprep.subr.bf16.mxu0 %v754
    %1010 = vmatpush1.bf16.msra.mxu0 %v753
    %1011 = vmatprep.subr.bf16.mxu0 %v760
    %1012 = vmatpush1.bf16.msra.mxu0 %v759
    %1013 = vmatprep.subr.bf16.mxu0 %v766
    %1014 = vmatpush1.bf16.msra.mxu0 %v765
    %1015 = vmatprep.subr.bf16.mxu0 %v772
    %1016 = vmatpush1.bf16.msra.mxu0 %v771
    %1017 = vmatprep.mubr.bf16.mxu0 %v46
    %1018 = vmatmul.mubr.bf16.gmra.mrb[0].mxu0 %v45
    %v1019 = vpop.f32.mrb[0].mxu0
    %v1020 = vadd.f32 %v204, %v1019
    %v1021 = vpop.f32.mrb[0].mxu0
    %v1022 = vadd.f32 %v208, %v1021
    %v1023 = vpop.f32.mrb[0].mxu0
    %v1024 = vpop.f32.mrb[0].mxu0
    %1025 = vdwg.mxu0
    %1026 = vmatprep.subr.bf16.mxu0 %v778
    %1027 = vmatpush1.bf16.msra.mxu0 %v777
    %1028 = vmatprep.subr.bf16.mxu0 %v784
    %1029 = vmatpush1.bf16.msra.mxu0 %v783
    %1030 = vmatprep.subr.bf16.mxu0 %v790
    %1031 = vmatpush1.bf16.msra.mxu0 %v789
    %1032 = vmatprep.subr.bf16.mxu0 %v796
    %1033 = vmatpush1.bf16.msra.mxu0 %v795
    %1034 = vmatprep.subr.bf16.mxu0 %v802
    %1035 = vmatpush1.bf16.msra.mxu0 %v801
    %1036 = vmatprep.subr.bf16.mxu0 %v808
    %1037 = vmatpush1.bf16.msra.mxu0 %v807
    %1038 = vmatprep.subr.bf16.mxu0 %v814
    %1039 = vmatpush1.bf16.msra.mxu0 %v813
    %1040 = vmatprep.subr.bf16.mxu0 %v820
    %1041 = vmatpush1.bf16.msra.mxu0 %v819
    %1042 = vmatprep.subr.bf16.mxu0 %v826
    %1043 = vmatpush1.bf16.msra.mxu0 %v825
    %1044 = vmatprep.subr.bf16.mxu0 0
    %1045 = vmatpush1.bf16.msra.mxu0 0
    %1046 = vmatprep.subr.bf16.mxu0 0
    %1047 = vmatpush1.bf16.msra.mxu0 0
    %1048 = vmatprep.subr.bf16.mxu0 0
    %1049 = vmatpush1.bf16.msra.mxu0 0
    %1050 = vmatprep.subr.bf16.mxu0 0
    %1051 = vmatpush1.bf16.msra.mxu0 0
    %1052 = vmatprep.subr.bf16.mxu0 0
    %1053 = vmatpush1.bf16.msra.mxu0 0
    %1054 = vmatprep.subr.bf16.mxu0 0
    %1055 = vmatpush1.bf16.msra.mxu0 0
    %1056 = vmatprep.subr.bf16.mxu0 0
    %1057 = vmatpush1.bf16.msra.mxu0 0
    %1058 = vmatprep.mubr.bf16.mxu0 %v983
    %1059 = vmatmul.mubr.bf16.gmra.mrb[0].mxu0 %v47
    %v1060 = vpop.f32.mrb[0].mxu0
    %v1061 = vadd.f32 %v1020, %v1060
    %v1062 = vpop.f32.mrb[0].mxu0
    %v1063 = vadd.f32 %v1022, %v1062
    %v1064 = vpop.f32.mrb[0].mxu0
    %v1065 = vpop.f32.mrb[0].mxu0
    %1066 = vdwg.mxu0
    %1067 = vmatprep.subr.bf16.mxu0 %v684
    %1068 = vmatpush1.bf16.msra.mxu0 %v683
    %1069 = vmatprep.subr.bf16.mxu0 %v690
    %1070 = vmatpush1.bf16.msra.mxu0 %v689
    %1071 = vmatprep.subr.bf16.mxu0 %v696
    %1072 = vmatpush1.bf16.msra.mxu0 %v695
    %1073 = vmatprep.subr.bf16.mxu0 %v702
    %1074 = vmatpush1.bf16.msra.mxu0 %v701
    %1075 = vmatprep.subr.bf16.mxu0 %v708
    %1076 = vmatpush1.bf16.msra.mxu0 %v707
    %1077 = vmatprep.subr.bf16.mxu0 %v714
    %1078 = vmatpush1.bf16.msra.mxu0 %v713
    %1079 = vmatprep.subr.bf16.mxu0 %v720
    %1080 = vmatpush1.bf16.msra.mxu0 %v719
    %1081 = vmatprep.subr.bf16.mxu0 %v726
    %1082 = vmatpush1.bf16.msra.mxu0 %v725
    %1083 = vmatprep.subr.bf16.mxu0 %v732
    %1084 = vmatpush1.bf16.msra.mxu0 %v731
    %1085 = vmatprep.subr.bf16.mxu0 %v738
    %1086 = vmatpush1.bf16.msra.mxu0 %v737
    %1087 = vmatprep.subr.bf16.mxu0 %v744
    %1088 = vmatpush1.bf16.msra.mxu0 %v743
    %1089 = vmatprep.subr.bf16.mxu0 %v750
    %1090 = vmatpush1.bf16.msra.mxu0 %v749
    %1091 = vmatprep.subr.bf16.mxu0 %v756
    %1092 = vmatpush1.bf16.msra.mxu0 %v755
    %1093 = vmatprep.subr.bf16.mxu0 %v762
    %1094 = vmatpush1.bf16.msra.mxu0 %v761
    %1095 = vmatprep.subr.bf16.mxu0 %v768
    %1096 = vmatpush1.bf16.msra.mxu0 %v767
    %1097 = vmatprep.subr.bf16.mxu0 %v774
    %1098 = vmatpush1.bf16.msra.mxu0 %v773
    %1099 = vmatprep.mubr.bf16.mxu0 %v46
    %1100 = vmatmul.mubr.bf16.gmra.mrb[0].mxu0 %v45
    %v1101 = vpop.f32.mrb[0].mxu0
    %v1102 = vadd.f32 %v212, %v1101
    %v1103 = vpop.f32.mrb[0].mxu0
    %v1104 = vadd.f32 %v216, %v1103
    %v1105 = vpop.f32.mrb[0].mxu0
    %v1106 = vpop.f32.mrb[0].mxu0
    %1107 = vdwg.mxu0
    %1108 = vmatprep.subr.bf16.mxu0 %v780
    %1109 = vmatpush1.bf16.msra.mxu0 %v779
    %1110 = vmatprep.subr.bf16.mxu0 %v786
    %1111 = vmatpush1.bf16.msra.mxu0 %v785
    %1112 = vmatprep.subr.bf16.mxu0 %v792
    %1113 = vmatpush1.bf16.msra.mxu0 %v791
    %1114 = vmatprep.subr.bf16.mxu0 %v798
    %1115 = vmatpush1.bf16.msra.mxu0 %v797
    %1116 = vmatprep.subr.bf16.mxu0 %v804
    %1117 = vmatpush1.bf16.msra.mxu0 %v803
    %1118 = vmatprep.subr.bf16.mxu0 %v810
    %1119 = vmatpush1.bf16.msra.mxu0 %v809
    %1120 = vmatprep.subr.bf16.mxu0 %v816
    %1121 = vmatpush1.bf16.msra.mxu0 %v815
    %1122 = vmatprep.subr.bf16.mxu0 %v822
    %1123 = vmatpush1.bf16.msra.mxu0 %v821
    %1124 = vmatprep.subr.bf16.mxu0 %v828
    %1125 = vmatpush1.bf16.msra.mxu0 %v827
    %1126 = vmatprep.subr.bf16.mxu0 0
    %1127 = vmatpush1.bf16.msra.mxu0 0
    %1128 = vmatprep.subr.bf16.mxu0 0
    %1129 = vmatpush1.bf16.msra.mxu0 0
    %1130 = vmatprep.subr.bf16.mxu0 0
    %1131 = vmatpush1.bf16.msra.mxu0 0
    %1132 = vmatprep.subr.bf16.mxu0 0
    %1133 = vmatpush1.bf16.msra.mxu0 0
    %1134 = vmatprep.subr.bf16.mxu0 0
    %1135 = vmatpush1.bf16.msra.mxu0 0
    %1136 = vmatprep.subr.bf16.mxu0 0
    %1137 = vmatpush1.bf16.msra.mxu0 0
    %1138 = vmatprep.subr.bf16.mxu0 0
    %1139 = vmatpush1.bf16.msra.mxu0 0
    %1140 = vmatprep.mubr.bf16.mxu0 %v983
    %1141 = vmatmul.mubr.bf16.gmra.mrb[0].mxu0 %v47
    %v1142 = vpop.f32.mrb[0].mxu0
    %v1143 = vadd.f32 %v1102, %v1142
    %v1144 = vpop.f32.mrb[0].mxu0
    %v1145 = vadd.f32 %v1104, %v1144
    %v1146 = vpop.f32.mrb[0].mxu0
    %v1147 = vpop.f32.mrb[0].mxu0
    %1148 = vdwg.mxu0
    %1149 = vmatprep.subr.bf16.mxu0 %v686
    %1150 = vmatpush1.bf16.msra.mxu0 %v685
    %1151 = vmatprep.subr.bf16.mxu0 %v692
    %1152 = vmatpush1.bf16.msra.mxu0 %v691
    %1153 = vmatprep.subr.bf16.mxu0 %v698
    %1154 = vmatpush1.bf16.msra.mxu0 %v697
    %1155 = vmatprep.subr.bf16.mxu0 %v704
    %1156 = vmatpush1.bf16.msra.mxu0 %v703
    %1157 = vmatprep.subr.bf16.mxu0 %v710
    %1158 = vmatpush1.bf16.msra.mxu0 %v709
    %1159 = vmatprep.subr.bf16.mxu0 %v716
    %1160 = vmatpush1.bf16.msra.mxu0 %v715
    %1161 = vmatprep.subr.bf16.mxu0 %v722
    %1162 = vmatpush1.bf16.msra.mxu0 %v721
    %1163 = vmatprep.subr.bf16.mxu0 %v728
    %1164 = vmatpush1.bf16.msra.mxu0 %v727
    %1165 = vmatprep.subr.bf16.mxu0 %v734
    %1166 = vmatpush1.bf16.msra.mxu0 %v733
    %1167 = vmatprep.subr.bf16.mxu0 %v740
    %1168 = vmatpush1.bf16.msra.mxu0 %v739
    %1169 = vmatprep.subr.bf16.mxu0 %v746
    %1170 = vmatpush1.bf16.msra.mxu0 %v745
    %1171 = vmatprep.subr.bf16.mxu0 %v752
    %1172 = vmatpush1.bf16.msra.mxu0 %v751
    %1173 = vmatprep.subr.bf16.mxu0 %v758
    %1174 = vmatpush1.bf16.msra.mxu0 %v757
    %1175 = vmatprep.subr.bf16.mxu0 %v764
    %1176 = vmatpush1.bf16.msra.mxu0 %v763
    %1177 = vmatprep.subr.bf16.mxu0 %v770
    %1178 = vmatpush1.bf16.msra.mxu0 %v769
    %1179 = vmatprep.subr.bf16.mxu0 %v776
    %1180 = vmatpush1.bf16.msra.mxu0 %v775
    %1181 = vmatprep.mubr.bf16.mxu0 %v46
    %1182 = vmatmul.mubr.bf16.gmra.mrb[0].mxu0 %v45
    %v1183 = vpop.f32.mrb[0].mxu0
    %v1184 = vadd.f32 %v220, %v1183
    %v1185 = vpop.f32.mrb[0].mxu0
    %v1186 = vadd.f32 %v224, %v1185
    %v1187 = vpop.f32.mrb[0].mxu0
    %v1188 = vpop.f32.mrb[0].mxu0
    %1189 = vdwg.mxu0
    %1190 = vmatprep.subr.bf16.mxu0 %v782
    %1191 = vmatpush1.bf16.msra.mxu0 %v781
    %1192 = vmatprep.subr.bf16.mxu0 %v788
    %1193 = vmatpush1.bf16.msra.mxu0 %v787
    %1194 = vmatprep.subr.bf16.mxu0 %v794
    %1195 = vmatpush1.bf16.msra.mxu0 %v793
    %1196 = vmatprep.subr.bf16.mxu0 %v800
    %1197 = vmatpush1.bf16.msra.mxu0 %v799
    %1198 = vmatprep.subr.bf16.mxu0 %v806
    %1199 = vmatpush1.bf16.msra.mxu0 %v805
    %1200 = vmatprep.subr.bf16.mxu0 %v812
    %1201 = vmatpush1.bf16.msra.mxu0 %v811
    %1202 = vmatprep.subr.bf16.mxu0 %v818
    %1203 = vmatpush1.bf16.msra.mxu0 %v817
    %1204 = vmatprep.subr.bf16.mxu0 %v824
    %1205 = vmatpush1.bf16.msra.mxu0 %v823
    %1206 = vmatprep.subr.bf16.mxu0 %v830
    %1207 = vmatpush1.bf16.msra.mxu0 %v829
    %1208 = vmatprep.subr.bf16.mxu0 0
    %1209 = vmatpush1.bf16.msra.mxu0 0
    %1210 = vmatprep.subr.bf16.mxu0 0
    %1211 = vmatpush1.bf16.msra.mxu0 0
    %1212 = vmatprep.subr.bf16.mxu0 0
    %1213 = vmatpush1.bf16.msra.mxu0 0
    %1214 = vmatprep.subr.bf16.mxu0 0
    %1215 = vmatpush1.bf16.msra.mxu0 0
    %1216 = vmatprep.subr.bf16.mxu0 0
    %1217 = vmatpush1.bf16.msra.mxu0 0
    %1218 = vmatprep.subr.bf16.mxu0 0
    %1219 = vmatpush1.bf16.msra.mxu0 0
    %1220 = vmatprep.subr.bf16.mxu0 0
    %1221 = vmatpush1.bf16.msra.mxu0 0
    %1222 = vmatprep.mubr.bf16.mxu0 %v983
    %1223 = vmatmul.mubr.bf16.gmra.mrb[0].mxu0 %v47
    %v1224 = vpop.f32.mrb[0].mxu0
    %v1225 = vadd.f32 %v1184, %v1224
    %v1226 = vpop.f32.mrb[0].mxu0
    %v1227 = vadd.f32 %v1186, %v1226
    %v1228 = vpop.f32.mrb[0].mxu0
    %v1229 = vpop.f32.mrb[0].mxu0
    %1230 = vdwg.mxu0
    %v1231 = vmax.f32 %v1061, 0.0
    %v1232 = vmax.f32 %v1063, 0.0
    %v1233 = vmax.f32 %v1143, 0.0
    %v1234 = vmax.f32 %v1145, 0.0
    %v1235 = vmax.f32 %v1225, 0.0
    %v1236 = vmax.f32 %v1227, 0.0
    %v1237 = vmax.f32 %v1231, %v1234
    %v1238 = vmax.f32 %v1232, %v1235
    %v1239 = vmax.f32 %v1233, %v1236
    %v1240 = vpack.c.bf16 %v1237, %v1237
    %v1241 = vpack.c.bf16 %v1238, %v1238
    %v1242 = vpack.c.bf16 %v1239, %v1239
    %v1243 = vld [vmem:[%s3] sm:$0xf]
    %v1244 = vld [vmem:[%s3 + $0x4] sm:$0xf]
    %v1245 = vld [vmem:[%s3 + $0x8] sm:$0xf]
    %v1246 = vld [vmem:[%s3 + $0xc] sm:$0xf]
    %v1247 = vld [vmem:[%s3 + $0x10] sm:$0xf]
    %v1248 = vld [vmem:[%s3 + $0x14] sm:$0xf]
    %v1249 = vld [vmem:[%s3 + $0x18] sm:$0xf]
    %v1250 = vld [vmem:[%s3 + $0x1c] sm:$0xf]
    %v1251 = vld [vmem:[%s3 + $0x20] sm:$0xf]
    %v1252 = vld [vmem:[%s3 + $0x24] sm:$0xf]
    %v1253 = vld [vmem:[%s3 + $0x28] sm:$0xf]
    %v1254 = vld [vmem:[%s3 + $0x2c] sm:$0xf]
    %v1255 = vld [vmem:[%s3 + $0x30] sm:$0xf]
    %v1256 = vld [vmem:[%s3 + $0x34] sm:$0xf]
    %v1257 = vld [vmem:[%s3 + $0x38] sm:$0xf]
    %v1258 = vld [vmem:[%s3 + $0x3c] sm:$0xf]
    %v1259 = vld [vmem:[%s3 + $0x40] sm:$0xf]
    %v1260 = vld [vmem:[%s3 + $0x44] sm:$0xf]
    %v1261 = vld [vmem:[%s3 + $0x48] sm:$0xf]
    %v1262 = vld [vmem:[%s3 + $0x4c] sm:$0xf]
    %v1263 = vld [vmem:[%s3 + $0x50] sm:$0xf]
    %v1264 = vld [vmem:[%s3 + $0x54] sm:$0xf]
    %v1265 = vld [vmem:[%s3 + $0x58] sm:$0xf]
    %v1266 = vld [vmem:[%s3 + $0x5c] sm:$0xf]
    %v1267 = vld [vmem:[%s3 + $0x60] sm:$0xf]
    %v1268 = vld [vmem:[%s3 + $0x64] sm:$0xf]
    %v1269 = vld [vmem:[%s3 + $0x68] sm:$0xf]
    %v1270 = vld [vmem:[%s3 + $0x6c] sm:$0xf]
    %v1271 = vld [vmem:[%s3 + $0x70] sm:$0xf]
    %v1272 = vld [vmem:[%s3 + $0x74] sm:$0xf]
    %v1273 = vld [vmem:[%s3 + $0x78] sm:$0xf]
    %v1274 = vld [vmem:[%s3 + $0x7c] sm:$0xf]
    %v1275 = vld [vmem:[%s3 + $0x80] sm:$0xf]
    %v1276 = vld [vmem:[%s3 + $0x84] sm:$0xf]
    %v1277 = vld [vmem:[%s3 + $0x88] sm:$0xf]
    %v1278 = vld [vmem:[%s3 + $0x8c] sm:$0xf]
    %v1279 = vld [vmem:[%s3 + $0x90] sm:$0xf]
    %v1280 = vld [vmem:[%s3 + $0x94] sm:$0xf]
    %v1281 = vld [vmem:[%s3 + $0x98] sm:$0xf]
    %v1282 = vld [vmem:[%s3 + $0x9c] sm:$0xf]
    %v1283 = vld [vmem:[%s3 + $0xa0] sm:$0xf]
    %v1284 = vld [vmem:[%s3 + $0xa4] sm:$0xf]
    %v1285 = vld [vmem:[%s3 + $0xa8] sm:$0xf]
    %v1286 = vld [vmem:[%s3 + $0xac] sm:$0xf]
    %v1287 = vld [vmem:[%s3 + $0xb0] sm:$0xf]
    %v1288 = vld [vmem:[%s3 + $0xb4] sm:$0xf]
    %v1289 = vld [vmem:[%s3 + $0xb8] sm:$0xf]
    %v1290 = vld [vmem:[%s3 + $0xbc] sm:$0xf]
    %v1291 = vld [vmem:[%s4] sm:$0x1]
    %v1293 = vlaneseq
    %v1294 = vshrl.u32 %v1293, 7
    %v1295 = vsub.s32 0, %v1294
    %v1296 = vrot.slane %v1291, %v1295
    %v1346 = vunpack.c.l.b16 %v1243
    %v1347 = vunpack.c.l.b16 %v1244
    %v1348 = vunpack.c.l.b16 %v1245
    %v1349 = vunpack.c.l.b16 %v1246
    %v1350 = vunpack.c.l.b16 %v1247
    %v1351 = vunpack.c.l.b16 %v1248
    %v1352 = vunpack.c.l.b16 %v1249
    %v1353 = vunpack.c.l.b16 %v1250
    %v1354 = vunpack.c.l.b16 %v1251
    %v1355 = vunpack.c.l.b16 %v1252
    %v1356 = vunpack.c.l.b16 %v1253
    %v1357 = vunpack.c.l.b16 %v1254
    %v1358 = vunpack.c.l.b16 %v1255
    %v1359 = vunpack.c.l.b16 %v1256
    %v1360 = vunpack.c.l.b16 %v1257
    %v1361 = vunpack.c.l.b16 %v1258
    %v1362 = vunpack.c.l.b16 %v1259
    %v1363 = vunpack.c.l.b16 %v1260
    %v1364 = vunpack.c.l.b16 %v1261
    %v1365 = vunpack.c.l.b16 %v1262
    %v1366 = vunpack.c.l.b16 %v1263
    %v1367 = vunpack.c.l.b16 %v1264
    %v1368 = vunpack.c.l.b16 %v1265
    %v1369 = vunpack.c.l.b16 %v1266
    %v1370 = vunpack.c.l.b16 %v1267
    %v1371 = vunpack.c.l.b16 %v1268
    %v1372 = vunpack.c.l.b16 %v1269
    %v1373 = vunpack.c.l.b16 %v1270
    %v1374 = vunpack.c.l.b16 %v1271
    %v1375 = vunpack.c.l.b16 %v1272
    %v1376 = vunpack.c.l.b16 %v1273
    %v1377 = vunpack.c.l.b16 %v1274
    %v1378 = vunpack.c.l.b16 %v1275
    %v1379 = vunpack.c.l.b16 %v1276
    %v1380 = vunpack.c.l.b16 %v1277
    %v1381 = vunpack.c.l.b16 %v1278
    %v1382 = vunpack.c.l.b16 %v1279
    %v1383 = vunpack.c.l.b16 %v1280
    %v1384 = vunpack.c.l.b16 %v1281
    %v1385 = vunpack.c.l.b16 %v1282
    %v1386 = vunpack.c.l.b16 %v1283
    %v1387 = vunpack.c.l.b16 %v1284
    %v1388 = vunpack.c.l.b16 %v1285
    %v1389 = vunpack.c.l.b16 %v1286
    %v1390 = vunpack.c.l.b16 %v1287
    %v1391 = vunpack.c.l.b16 %v1288
    %v1392 = vunpack.c.l.b16 %v1289
    %v1393 = vunpack.c.l.b16 %v1290
    %v1394 = vpack.c.b16 %v1347, %v1346
    %v1395 = vpack.c.b16 %v1349, %v1348
    %v1396 = vpack.c.b16 %v1351, %v1350
    %v1397 = vpack.c.b16 %v1353, %v1352
    %v1398 = vpack.c.b16 %v1355, %v1354
    %v1399 = vpack.c.b16 %v1357, %v1356
    %v1400 = vpack.c.b16 %v1359, %v1358
    %v1401 = vpack.c.b16 %v1361, %v1360
    %v1402 = vpack.c.b16 %v1363, %v1362
    %v1403 = vpack.c.b16 %v1365, %v1364
    %v1404 = vpack.c.b16 %v1367, %v1366
    %v1405 = vpack.c.b16 %v1369, %v1368
    %v1406 = vpack.c.b16 %v1371, %v1370
    %v1407 = vpack.c.b16 %v1373, %v1372
    %v1408 = vpack.c.b16 %v1375, %v1374
    %v1409 = vpack.c.b16 %v1377, %v1376
    %v1410 = vpack.c.b16 %v1379, %v1378
    %v1411 = vpack.c.b16 %v1381, %v1380
    %v1412 = vpack.c.b16 %v1383, %v1382
    %v1413 = vpack.c.b16 %v1385, %v1384
    %v1414 = vpack.c.b16 %v1387, %v1386
    %v1415 = vpack.c.b16 %v1389, %v1388
    %v1416 = vpack.c.b16 %v1391, %v1390
    %v1417 = vpack.c.b16 %v1393, %v1392
    %1442 = vmatprep.subr.bf16.mxu0 0
    %1443 = vmatpush1.bf16.msra.mxu0 %v1394
    %1444 = vmatprep.subr.bf16.mxu0 0
    %1445 = vmatpush1.bf16.msra.mxu0 %v1395
    %1446 = vmatprep.subr.bf16.mxu0 0
    %1447 = vmatpush1.bf16.msra.mxu0 %v1396
    %1448 = vmatprep.subr.bf16.mxu0 0
    %1449 = vmatpush1.bf16.msra.mxu0 %v1397
    %1450 = vmatprep.subr.bf16.mxu0 0
    %1451 = vmatpush1.bf16.msra.mxu0 %v1398
    %1452 = vmatprep.subr.bf16.mxu0 0
    %1453 = vmatpush1.bf16.msra.mxu0 %v1399
    %1454 = vmatprep.subr.bf16.mxu0 0
    %1455 = vmatpush1.bf16.msra.mxu0 %v1400
    %1456 = vmatprep.subr.bf16.mxu0 0
    %1457 = vmatpush1.bf16.msra.mxu0 %v1401
    %1458 = vmatprep.subr.bf16.mxu0 0
    %1459 = vmatpush1.bf16.msra.mxu0 %v1402
    %1460 = vmatprep.subr.bf16.mxu0 0
    %1461 = vmatpush1.bf16.msra.mxu0 %v1403
    %1462 = vmatprep.subr.bf16.mxu0 0
    %1463 = vmatpush1.bf16.msra.mxu0 %v1404
    %1464 = vmatprep.subr.bf16.mxu0 0
    %1465 = vmatpush1.bf16.msra.mxu0 %v1405
    %1466 = vmatprep.subr.bf16.mxu0 0
    %1467 = vmatpush1.bf16.msra.mxu0 %v1406
    %1468 = vmatprep.subr.bf16.mxu0 0
    %1469 = vmatpush1.bf16.msra.mxu0 %v1407
    %1470 = vmatprep.subr.bf16.mxu0 0
    %1471 = vmatpush1.bf16.msra.mxu0 %v1408
    %1472 = vmatprep.subr.bf16.mxu0 0
    %1473 = vmatpush1.bf16.msra.mxu0 %v1409
    %1474 = vmatprep.mubr.bf16.mxu0 %v1241
    %1475 = vmatmul.mubr.bf16.gmra.mrb[0].mxu0 %v1240
    %v1476 = vpop.f32.mrb[0].mxu0
    %v1477 = vadd.f32 %v1296, %v1476
    %v1478 = vpop.f32.mrb[0].mxu0
    %v1479 = vpop.f32.mrb[0].mxu0
    %v1480 = vpop.f32.mrb[0].mxu0
    %1481 = vdwg.mxu0
    %1482 = vmatprep.subr.bf16.mxu0 0
    %1483 = vmatpush1.bf16.msra.mxu0 %v1410
    %1484 = vmatprep.subr.bf16.mxu0 0
    %1485 = vmatpush1.bf16.msra.mxu0 %v1411
    %1486 = vmatprep.subr.bf16.mxu0 0
    %1487 = vmatpush1.bf16.msra.mxu0 %v1412
    %1488 = vmatprep.subr.bf16.mxu0 0
    %1489 = vmatpush1.bf16.msra.mxu0 %v1413
    %1490 = vmatprep.subr.bf16.mxu0 0
    %1491 = vmatpush1.bf16.msra.mxu0 %v1414
    %1492 = vmatprep.subr.bf16.mxu0 0
    %1493 = vmatpush1.bf16.msra.mxu0 %v1415
    %1494 = vmatprep.subr.bf16.mxu0 0
    %1495 = vmatpush1.bf16.msra.mxu0 %v1416
    %1496 = vmatprep.subr.bf16.mxu0 0
    %1497 = vmatpush1.bf16.msra.mxu0 %v1417
    %1498 = vmatprep.subr.bf16.mxu0 0
    %1499 = vmatpush1.bf16.msra.mxu0 0
    %1500 = vmatprep.subr.bf16.mxu0 0
    %1501 = vmatpush1.bf16.msra.mxu0 0
    %1502 = vmatprep.subr.bf16.mxu0 0
    %1503 = vmatpush1.bf16.msra.mxu0 0
    %1504 = vmatprep.subr.bf16.mxu0 0
    %1505 = vmatpush1.bf16.msra.mxu0 0
    %1506 = vmatprep.subr.bf16.mxu0 0
    %1507 = vmatpush1.bf16.msra.mxu0 0
    %1508 = vmatprep.subr.bf16.mxu0 0
    %1509 = vmatpush1.bf16.msra.mxu0 0
    %1510 = vmatprep.subr.bf16.mxu0 0
    %1511 = vmatpush1.bf16.msra.mxu0 0
    %1512 = vmatprep.subr.bf16.mxu0 0
    %1513 = vmatpush1.bf16.msra.mxu0 0
    %1514 = vmatprep.mubr.bf16.mxu0 0
    %1515 = vmatmul.mubr.bf16.gmra.mrb[0].mxu0 %v1242
    %v1516 = vpop.f32.mrb[0].mxu0
    %v1517 = vadd.f32 %v1477, %v1516
    %v1518 = vpop.f32.mrb[0].mxu0
    %v1519 = vpop.f32.mrb[0].mxu0
    %v1520 = vpop.f32.mrb[0].mxu0
    %1521 = vdwg.mxu0
    %v1522 = vmax.f32 %v1517, 0.0
    %v1523 = vld [vmem:[%s5] sm:$0xff]
    %v1524 = vld [vmem:[%s5 + $0x8] sm:$0xff]
    %v1525 = vld [vmem:[%s6] sm:$0x1]
    %v1527 = vlaneseq
    %v1528 = vshrl.u32 %v1527, 7
    %v1529 = vsub.s32 0, %v1528
    %v1530 = vrot.slane %v1525, %v1529
    %v1533 = vsel %vm981, %v1522, 0
    %1535 = vmatprep.subr.mxu0 0.0
    %1536 = vmatpush1.msra.mxu0 %v1523
    %1537 = vmatprep.subr.mxu0 0.0
    %1538 = vmatpush1.msra.mxu0 %v1524
    %1539 = vmatprep.subr.mxu0 0.0
    %1540 = vmatpush1.msra.mxu0 0.0
    %1541 = vmatprep.subr.mxu0 0.0
    %1542 = vmatpush1.msra.mxu0 0.0
    %1543 = vmatprep.subr.mxu0 0.0
    %1544 = vmatpush1.msra.mxu0 0.0
    %1545 = vmatprep.subr.mxu0 0.0
    %1546 = vmatpush1.msra.mxu0 0.0
    %1547 = vmatprep.subr.mxu0 0.0
    %1548 = vmatpush1.msra.mxu0 0.0
    %1549 = vmatprep.subr.mxu0 0.0
    %1550 = vmatpush1.msra.mxu0 0.0
    %1551 = vmatprep.subr.mxu0 0.0
    %1552 = vmatpush1.msra.mxu0 0.0
    %1553 = vmatprep.subr.mxu0 0.0
    %1554 = vmatpush1.msra.mxu0 0.0
    %1555 = vmatprep.subr.mxu0 0.0
    %1556 = vmatpush1.msra.mxu0 0.0
    %1557 = vmatprep.subr.mxu0 0.0
    %1558 = vmatpush1.msra.mxu0 0.0
    %1559 = vmatprep.subr.mxu0 0.0
    %1560 = vmatpush1.msra.mxu0 0.0
    %1561 = vmatprep.subr.mxu0 0.0
    %1562 = vmatpush1.msra.mxu0 0.0
    %1563 = vmatprep.subr.mxu0 0.0
    %1564 = vmatpush1.msra.mxu0 0.0
    %1565 = vmatprep.subr.mxu0 0.0
    %1566 = vmatpush1.msra.mxu0 0.0
    %1567 = vmatprep.subr.mxu0 0.0
    %1568 = vmatpush1.msra.mxu0 0.0
    %1569 = vmatprep.subr.mxu0 0.0
    %1570 = vmatpush1.msra.mxu0 0.0
    %1571 = vmatprep.subr.mxu0 0.0
    %1572 = vmatpush1.msra.mxu0 0.0
    %1573 = vmatprep.subr.mxu0 0.0
    %1574 = vmatpush1.msra.mxu0 0.0
    %1575 = vmatprep.subr.mxu0 0.0
    %1576 = vmatpush1.msra.mxu0 0.0
    %1577 = vmatprep.subr.mxu0 0.0
    %1578 = vmatpush1.msra.mxu0 0.0
    %1579 = vmatprep.subr.mxu0 0.0
    %1580 = vmatpush1.msra.mxu0 0.0
    %1581 = vmatprep.subr.mxu0 0.0
    %1582 = vmatpush1.msra.mxu0 0.0
    %1583 = vmatprep.subr.mxu0 0.0
    %1584 = vmatpush1.msra.mxu0 0.0
    %1585 = vmatprep.subr.mxu0 0.0
    %1586 = vmatpush1.msra.mxu0 0.0
    %1587 = vmatprep.subr.mxu0 0.0
    %1588 = vmatpush1.msra.mxu0 0.0
    %1589 = vmatprep.subr.mxu0 0.0
    %1590 = vmatpush1.msra.mxu0 0.0
    %1591 = vmatprep.subr.mxu0 0.0
    %1592 = vmatpush1.msra.mxu0 0.0
    %1593 = vmatprep.subr.mxu0 0.0
    %1594 = vmatpush1.msra.mxu0 0.0
    %1595 = vmatprep.subr.mxu0 0.0
    %1596 = vmatpush1.msra.mxu0 0.0
    %1597 = vmatprep.subr.mxu0 0.0
    %1598 = vmatpush1.msra.mxu0 0.0
    %1599 = vmatprep.mubr.f32.mxu0 0.0
    %1600 = vmatmul.mubr.f32.gmra.mrb[0].mxu0 %v1533
    %v1601 = vpop.f32.mrb[0].mxu0
    %v1602 = vadd.f32 %v1530, %v1601
    %v1603 = vpop.f32.mrb[0].mxu0
    %1604 = vdwg.mxu0
    %1605 = vmax.xlane.f32.xlu0 %v1602
    %v1606 = vpop.xlane.xlu0 %1605
    %v1607 = vsub.f32 %v1602, %v1606
    %v1608 = vmul.f32 %v1607, 1.442695
    %v1609 = vpow.pop %v1608
    %1610 = vadd.xlane.f32.xlu0 %v1609
    %v1611 = vpop.xlane.xlu0 %1610
    %v1612 = vrcp.pop %v1611
    %v1613 = vmul.f32 %v1609, %v1612
    %1614 = vst [vmem:[%s7] sm:$0xff] %v1613
    // Predicated region
    $region34: #{seq_32x1_16_forward.1} parent=1 // pred_check
      _
    $region35: #{seq_32x1_16_forward.1} parent=1 // pred_check_branch
      %1616 = sbr.rel (0) target = $region37
    $region36: #{seq_32x1_16_forward.1} parent=1 // pred_region
      _
    $region37: #{seq_32x1_16_forward.1} parent=1 // pred_fallthru
      _
    // Predicated region
    $region38: #{seq_32x1_16_forward.1} parent=1 // pred_check
      _
    $region39: #{seq_32x1_16_forward.1} parent=1 // pred_check_branch
      %1618 = sbr.rel (0) target = $region41
    $region40: #{seq_32x1_16_forward.1} parent=1 // pred_region
      _
    $region41: #{seq_32x1_16_forward.1} parent=1 // pred_fallthru
      _
    %1619 = vsyncpa [#allocation3], 1

</llo_original>
